<compile_context>
chip_gen: v5e
topology: v5e:2x2
jax: 0.10.0
libtpu: 0.0.40
codegen_flags: <defaults>
</compile_context>

<pallas_src>
import jax
import jax.numpy as jnp
from jax import lax
from jax.experimental import pallas as pl
from jax.experimental.pallas import tpu as pltpu

# ---- configuration (small, consistent with the module) ----------------------
SEQ_LEN = 8
BATCH = 2
EMBED_DIM = 32
FF_DIM = 64
NUM_HEADS = 4
HEAD_DIM = EMBED_DIM // NUM_HEADS
DROPOUT = 0.0          # inference semantics
LN_EPS = 1e-5

_VMEM = pl.BlockSpec(memory_space=pltpu.MemorySpace.VMEM)


# ---- in-kernel helpers -------------------------------------------------------
def _layer_norm(h, gamma, beta):
    mu = jnp.mean(h, axis=-1, keepdims=True)
    var = jnp.mean(jnp.square(h - mu), axis=-1, keepdims=True)
    return (h - mu) * lax.rsqrt(var + LN_EPS) * gamma + beta


def _gelu_exact(y):
    # exact (erf-based) GELU, matching F.gelu default
    return 0.5 * y * (1.0 + lax.erf(y * (2.0 ** -0.5)))


# ---- fused kernel ------------------------------------------------------------
def _transformer_layer_kernel(
    x_ref,                  # (B*S, E)   row = b*S + s
    wqkv_ref, bqkv_ref,     # (E, 3E), (1, 3E)   -- 1/sqrt(D) folded into Q slice
    wo_ref, bo_ref,         # (E, E), (1, E)
    g1_ref, be1_ref,        # (1, E), (1, E)     -- attn LayerNorm
    w1_ref, bf1_ref,        # (E, F), (1, F)
    w2_ref, bf2_ref,        # (F, E), (1, E)
    g2_ref, be2_ref,        # (1, E), (1, E)     -- ff LayerNorm
    o_ref,                  # (B*S, E)
    attn_ref,               # (B, H, S, S)
):
    BS, E = x_ref.shape
    B, H, S, _ = attn_ref.shape
    D = E // H
    f32 = jnp.float32

    x = x_ref[...]                                                   # (B*S, E)

    # ---- packed QKV projection: one dense matmul, 96/128 lanes ----
    qkv = jnp.dot(x, wqkv_ref[...], preferred_element_type=f32) + bqkv_ref[...]

    # ---- per-(b, h) attention core (statically unrolled, B*H = 8) ----
    ctx_blocks = []
    for b in range(B):
        q_b = qkv[b * S:(b + 1) * S, 0 * E:1 * E]                    # (S, E)
        k_b = qkv[b * S:(b + 1) * S, 1 * E:2 * E]
        v_b = qkv[b * S:(b + 1) * S, 2 * E:3 * E]

        head_ctx = []
        head_p = []
        for h in range(H):
            q_h = q_b[:, h * D:(h + 1) * D]                          # (S, D)
            k_h = k_b[:, h * D:(h + 1) * D]
            v_h = v_b[:, h * D:(h + 1) * D]

            # scores = q @ k^T (contract last dims; no materialized transpose)
            s = lax.dot_general(q_h, k_h, (((1,), (1,)), ((), ())),
                                preferred_element_type=f32)          # (S, S)
            m = jnp.max(s, axis=-1, keepdims=True)
            e = jnp.exp(s - m)
            l = jnp.sum(e, axis=-1, keepdims=True)
            p = e * pl.reciprocal(l, approx=True)                    # EUP vrcp

            head_p.append(p)
            head_ctx.append(jnp.dot(p, v_h, preferred_element_type=f32))

        # one attention-prob store per batch (instead of per head)
        attn_ref[b] = jnp.stack(head_p, axis=0).astype(attn_ref.dtype)
        # lane-concat per-head contexts -> (S, E)
        ctx_blocks.append(jnp.concatenate(head_ctx, axis=1))

    ctx = jnp.concatenate(ctx_blocks, axis=0)                        # (B*S, E)

    # ---- dense out-projection ----
    attn_out = jnp.dot(ctx, wo_ref[...], preferred_element_type=f32) + bo_ref[...]

    # ---- residual + LayerNorm 1 (dropout p=0: no-op) ----
    h1 = _layer_norm(x + attn_out, g1_ref[...], be1_ref[...])

    # ---- feed-forward: gelu(fc1) -> fc2, batch-flattened ----
    f = jnp.dot(h1, w1_ref[...], preferred_element_type=f32) + bf1_ref[...]
    f = _gelu_exact(f)
    f = jnp.dot(f, w2_ref[...], preferred_element_type=f32) + bf2_ref[...]

    # ---- residual + LayerNorm 2, single dense store ----
    o_ref[...] = _layer_norm(h1 + f, g2_ref[...], be2_ref[...]).astype(o_ref.dtype)


# ---- TransformerLayer forward (self-attention branch, with_external=False) ---
def transformer_layer_forward(params, x):
    """x: (seq_len, bsz, embed_dim) -> (out, self_attn (B*H,S,S), None)."""
    S, B, E = x.shape
    H = NUM_HEADS

    # layout glue: batch-major, flattened so the kernel sees a lane-dense 2-D slab
    x_flat = jnp.transpose(x, (1, 0, 2)).reshape(B * S, E)           # (B*S, E)

    out_flat, attn_w = pl.pallas_call(
        _transformer_layer_kernel,
        out_shape=(
            jax.ShapeDtypeStruct((B * S, E), jnp.float32),
            jax.ShapeDtypeStruct((B, H, S, S), jnp.float32),
        ),
        in_specs=[_VMEM] * 13,
        out_specs=(_VMEM, _VMEM),
    )(
        x_flat,
        params["wqkv"], params["bqkv"],
        params["wo"], params["bo"],
        params["ln1_g"], params["ln1_b"],
        params["fc1_w_t"], params["fc1_b"],
        params["fc2_w_t"], params["fc2_b"],
        params["ln2_g"], params["ln2_b"],
    )

    out = jnp.transpose(out_flat.reshape(B, S, E), (1, 0, 2))        # (S, B, E)
    self_attn = attn_w.reshape(B * H, S, S)                          # torch index = b*H + h
    return out, self_attn, None


# ---- parameters: raw torch-layout init + one-time kernel preprocessing -------
def init_raw_params(key, embed_dim, ff_dim):
    std = 0.02
    E, F = embed_dim, ff_dim
    k_in, k_out, k_fc1, k_fc2 = jax.random.split(key, 4)
    return {
        "in_proj_w": std * jax.random.normal(k_in, (3 * E, E), jnp.float32),
        "in_proj_b": jnp.zeros((3 * E,), jnp.float32),
        "out_proj_w": std * jax.random.normal(k_out, (E, E), jnp.float32),
        "out_proj_b": jnp.zeros((E,), jnp.float32),
        "ln1_g": jnp.ones((E,), jnp.float32),
        "ln1_b": jnp.zeros((E,), jnp.float32),
        "fc1_w": std * jax.random.normal(k_fc1, (F, E), jnp.float32),
        "fc1_b": jnp.zeros((F,), jnp.float32),
        "fc2_w": std * jax.random.normal(k_fc2, (E, F), jnp.float32),
        "fc2_b": jnp.zeros((E,), jnp.float32),
        "ln2_g": jnp.ones((E,), jnp.float32),
        "ln2_b": jnp.zeros((E,), jnp.float32),
    }


def preprocess_params(raw, embed_dim, ff_dim, num_heads):
    """One-time weight preprocessing: QKV packing, transposes, scale folding."""
    E, F, H = embed_dim, ff_dim, num_heads
    D = E // H
    scaling = D ** (-0.5)

    # packed QKV: qkv = x @ in_proj_w.T + in_proj_b ; columns [0:E]=q, [E:2E]=k, [2E:3E]=v
    wqkv = raw["in_proj_w"].T                                   # (E, 3E)
    bqkv = raw["in_proj_b"].reshape(1, 3 * E)
    col_scale = jnp.concatenate(
        [jnp.full((E,), scaling, jnp.float32), jnp.ones((2 * E,), jnp.float32)])
    wqkv = wqkv * col_scale[None, :]                            # fold 1/sqrt(D) into Q
    bqkv = bqkv * col_scale[None, :]

    return {
        "wqkv": wqkv,
        "bqkv": bqkv,
        "wo": raw["out_proj_w"].T,                              # (E, E): ctx @ Wo^T
        "bo": raw["out_proj_b"].reshape(1, E),
        "ln1_g": raw["ln1_g"].reshape(1, E),
        "ln1_b": raw["ln1_b"].reshape(1, E),
        "fc1_w_t": raw["fc1_w"].T,                              # (E, F)
        "fc1_b": raw["fc1_b"].reshape(1, F),
        "fc2_w_t": raw["fc2_w"].T,                              # (F, E)
        "fc2_b": raw["fc2_b"].reshape(1, E),
        "ln2_g": raw["ln2_g"].reshape(1, E),
        "ln2_b": raw["ln2_b"].reshape(1, E),
    }


# ---- plain-JAX reference (mirrors the PyTorch module) for validation ---------
def _ln_ref(h, g, b):
    mu = jnp.mean(h, axis=-1, keepdims=True)
    var = jnp.mean(jnp.square(h - mu), axis=-1, keepdims=True)
    return (h - mu) / jnp.sqrt(var + LN_EPS) * g + b


def reference_forward(raw, x):
    S, B, E = x.shape
    H, D = NUM_HEADS, HEAD_DIM
    hi = jax.lax.Precision.HIGHEST
    scaling = D ** (-0.5)

    x2 = x.reshape(S * B, E)
    qkv = jnp.dot(x2, raw["in_proj_w"].T, precision=hi) + raw["in_proj_b"]
    q, k, v = qkv[:, :E], qkv[:, E:2 * E], qkv[:, 2 * E:]
    q = q * scaling
    q = jnp.transpose(q.reshape(S, B * H, D), (1, 0, 2))
    k = jnp.transpose(k.reshape(S, B * H, D), (1, 0, 2))
    v = jnp.transpose(v.reshape(S, B * H, D), (1, 0, 2))
    s = jnp.einsum("bqd,bkd->bqk", q, k, precision=hi)
    p = jax.nn.softmax(s, axis=-1)
    ctx = jnp.einsum("bqk,bkd->bqd", p, v, precision=hi)
    attn = jnp.transpose(ctx, (1, 0, 2)).reshape(S * B, E)
    attn = jnp.dot(attn, raw["out_proj_w"].T, precision=hi) + raw["out_proj_b"]
    h1 = _ln_ref(x2 + attn, raw["ln1_g"], raw["ln1_b"])
    f = jnp.dot(h1, raw["fc1_w"].T, precision=hi) + raw["fc1_b"]
    f = 0.5 * f * (1.0 + lax.erf(f * (2.0 ** -0.5)))
    f = jnp.dot(f, raw["fc2_w"].T, precision=hi) + raw["fc2_b"]
    out = _ln_ref(h1 + f, raw["ln2_g"], raw["ln2_b"])
    return out.reshape(S, B, E), p


if __name__ == "__main__":
    key = jax.random.PRNGKey(0)
    k_param, k_x = jax.random.split(key)

    raw = init_raw_params(k_param, EMBED_DIM, FF_DIM)
    params = preprocess_params(raw, EMBED_DIM, FF_DIM, NUM_HEADS)
    # x: (seq_len, bsz, embed_dim), the PyTorch module's input convention
    x = jax.random.normal(k_x, (SEQ_LEN, BATCH, EMBED_DIM), jnp.float32)

    fwd = jax.jit(transformer_layer_forward)
    out, self_attn, external_attn = fwd(params, x)
    jax.block_until_ready((out, self_attn))

    assert out.shape == (SEQ_LEN, BATCH, EMBED_DIM)
    assert self_attn.shape == (BATCH * NUM_HEADS, SEQ_LEN, SEQ_LEN)
    assert external_attn is None

    # numerical check against the plain-JAX reference of the PyTorch forward
    ref_out, ref_attn = jax.jit(reference_forward)(raw, x)
    err_out = float(jnp.max(jnp.abs(out - ref_out)))
    err_attn = float(jnp.max(jnp.abs(self_attn - ref_attn)))
    assert err_out < 2e-3, f"output mismatch: {err_out}"
    assert err_attn < 2e-3, f"attn-weight mismatch: {err_attn}"

    print("KERNEL_OK")
</pallas_src>

<mosaic_0001>
module attributes {stable_mosaic.version = 11 : i64} {
  func.func @_transformer_layer_kernel(%arg0: memref<16x32xf32, #tpu.memory_space<vmem>>, %arg1: memref<32x96xf32, #tpu.memory_space<vmem>>, %arg2: memref<1x96xf32, #tpu.memory_space<vmem>>, %arg3: memref<32x32xf32, #tpu.memory_space<vmem>>, %arg4: memref<1x32xf32, #tpu.memory_space<vmem>>, %arg5: memref<1x32xf32, #tpu.memory_space<vmem>>, %arg6: memref<1x32xf32, #tpu.memory_space<vmem>>, %arg7: memref<32x64xf32, #tpu.memory_space<vmem>>, %arg8: memref<1x64xf32, #tpu.memory_space<vmem>>, %arg9: memref<64x32xf32, #tpu.memory_space<vmem>>, %arg10: memref<1x32xf32, #tpu.memory_space<vmem>>, %arg11: memref<1x32xf32, #tpu.memory_space<vmem>>, %arg12: memref<1x32xf32, #tpu.memory_space<vmem>>, %arg13: memref<16x32xf32, #tpu.memory_space<vmem>>, %arg14: memref<2x4x8x8xf32, #tpu.memory_space<vmem>>) attributes {dimension_semantics = [], scalar_prefetch = 0 : i64, scratch_operands = 0 : i64, tpu.core_type = #tpu.core_type<tc>} {
    %c0 = arith.constant 0 : index
    %c0_0 = arith.constant 0 : index
    %0 = vector.load %arg0[%c0, %c0_0] : memref<16x32xf32, #tpu.memory_space<vmem>>, vector<16x32xf32>
    %c0_1 = arith.constant 0 : index
    %c0_2 = arith.constant 0 : index
    %1 = vector.load %arg1[%c0_1, %c0_2] : memref<32x96xf32, #tpu.memory_space<vmem>>, vector<32x96xf32>
    %cst = arith.constant dense<0.000000e+00> : vector<16x96xf32>
    %2 = tpu.matmul %0, %1, %cst {dimension_numbers = #tpu.dot_dimension_numbers<[1], [0], [0], [1], [0, 0, 1, 1], [], []>} : vector<16x32xf32>, vector<32x96xf32>, vector<16x96xf32> -> vector<16x96xf32>
    %c0_3 = arith.constant 0 : index
    %c0_4 = arith.constant 0 : index
    %3 = vector.load %arg2[%c0_3, %c0_4] : memref<1x96xf32, #tpu.memory_space<vmem>>, vector<1x96xf32>
    %4 = vector.broadcast %3 : vector<1x96xf32> to vector<16x96xf32>
    %5 = arith.addf %2, %4 : vector<16x96xf32>
    %6 = vector.extract_strided_slice %5 {offsets = [0, 0], sizes = [8, 32], strides = [1, 1]} : vector<16x96xf32> to vector<8x32xf32>
    %7 = vector.extract_strided_slice %5 {offsets = [0, 32], sizes = [8, 32], strides = [1, 1]} : vector<16x96xf32> to vector<8x32xf32>
    %8 = vector.extract_strided_slice %5 {offsets = [0, 64], sizes = [8, 32], strides = [1, 1]} : vector<16x96xf32> to vector<8x32xf32>
    %9 = vector.extract_strided_slice %6 {offsets = [0, 0], sizes = [8, 8], strides = [1, 1]} : vector<8x32xf32> to vector<8x8xf32>
    %10 = vector.extract_strided_slice %7 {offsets = [0, 0], sizes = [8, 8], strides = [1, 1]} : vector<8x32xf32> to vector<8x8xf32>
    %11 = vector.extract_strided_slice %8 {offsets = [0, 0], sizes = [8, 8], strides = [1, 1]} : vector<8x32xf32> to vector<8x8xf32>
    %cst_5 = arith.constant dense<0.000000e+00> : vector<8x8xf32>
    %12 = tpu.matmul %9, %10, %cst_5 {dimension_numbers = #tpu.dot_dimension_numbers<[1], [1], [0], [0], [0, 0, 1, 0], [], []>} : vector<8x8xf32>, vector<8x8xf32>, vector<8x8xf32> -> vector<8x8xf32>
    %cst_6 = arith.constant dense<0xFF800000> : vector<8xf32>
    %13 = vector.multi_reduction <maximumf>, %12, %cst_6 [1] : vector<8x8xf32> to vector<8xf32>
    %14 = vector.shape_cast %13 : vector<8xf32> to vector<8x1xf32>
    %15 = vector.broadcast %14 : vector<8x1xf32> to vector<8x8xf32>
    %16 = arith.subf %12, %15 : vector<8x8xf32>
    %17 = math.exp %16 : vector<8x8xf32>
    %cst_7 = arith.constant dense<0.000000e+00> : vector<8xf32>
    %18 = vector.multi_reduction <add>, %17, %cst_7 [1] : vector<8x8xf32> to vector<8xf32>
    %19 = vector.shape_cast %18 : vector<8xf32> to vector<8x1xf32>
    %20 = tpu.reciprocal %19 {approx = true} : vector<8x1xf32> -> vector<8x1xf32>
    %21 = vector.broadcast %20 : vector<8x1xf32> to vector<8x8xf32>
    %22 = arith.mulf %17, %21 : vector<8x8xf32>
    %cst_8 = arith.constant dense<0.000000e+00> : vector<8x8xf32>
    %23 = tpu.matmul %22, %11, %cst_8 {dimension_numbers = #tpu.dot_dimension_numbers<[1], [0], [0], [1], [0, 0, 1, 1], [], []>} : vector<8x8xf32>, vector<8x8xf32>, vector<8x8xf32> -> vector<8x8xf32>
    %24 = vector.extract_strided_slice %6 {offsets = [0, 8], sizes = [8, 8], strides = [1, 1]} : vector<8x32xf32> to vector<8x8xf32>
    %25 = vector.extract_strided_slice %7 {offsets = [0, 8], sizes = [8, 8], strides = [1, 1]} : vector<8x32xf32> to vector<8x8xf32>
    %26 = vector.extract_strided_slice %8 {offsets = [0, 8], sizes = [8, 8], strides = [1, 1]} : vector<8x32xf32> to vector<8x8xf32>
    %cst_9 = arith.constant dense<0.000000e+00> : vector<8x8xf32>
    %27 = tpu.matmul %24, %25, %cst_9 {dimension_numbers = #tpu.dot_dimension_numbers<[1], [1], [0], [0], [0, 0, 1, 0], [], []>} : vector<8x8xf32>, vector<8x8xf32>, vector<8x8xf32> -> vector<8x8xf32>
    %cst_10 = arith.constant dense<0xFF800000> : vector<8xf32>
    %28 = vector.multi_reduction <maximumf>, %27, %cst_10 [1] : vector<8x8xf32> to vector<8xf32>
    %29 = vector.shape_cast %28 : vector<8xf32> to vector<8x1xf32>
    %30 = vector.broadcast %29 : vector<8x1xf32> to vector<8x8xf32>
    %31 = arith.subf %27, %30 : vector<8x8xf32>
    %32 = math.exp %31 : vector<8x8xf32>
    %cst_11 = arith.constant dense<0.000000e+00> : vector<8xf32>
    %33 = vector.multi_reduction <add>, %32, %cst_11 [1] : vector<8x8xf32> to vector<8xf32>
    %34 = vector.shape_cast %33 : vector<8xf32> to vector<8x1xf32>
    %35 = tpu.reciprocal %34 {approx = true} : vector<8x1xf32> -> vector<8x1xf32>
    %36 = vector.broadcast %35 : vector<8x1xf32> to vector<8x8xf32>
    %37 = arith.mulf %32, %36 : vector<8x8xf32>
    %cst_12 = arith.constant dense<0.000000e+00> : vector<8x8xf32>
    %38 = tpu.matmul %37, %26, %cst_12 {dimension_numbers = #tpu.dot_dimension_numbers<[1], [0], [0], [1], [0, 0, 1, 1], [], []>} : vector<8x8xf32>, vector<8x8xf32>, vector<8x8xf32> -> vector<8x8xf32>
    %39 = vector.extract_strided_slice %6 {offsets = [0, 16], sizes = [8, 8], strides = [1, 1]} : vector<8x32xf32> to vector<8x8xf32>
    %40 = vector.extract_strided_slice %7 {offsets = [0, 16], sizes = [8, 8], strides = [1, 1]} : vector<8x32xf32> to vector<8x8xf32>
    %41 = vector.extract_strided_slice %8 {offsets = [0, 16], sizes = [8, 8], strides = [1, 1]} : vector<8x32xf32> to vector<8x8xf32>
    %cst_13 = arith.constant dense<0.000000e+00> : vector<8x8xf32>
    %42 = tpu.matmul %39, %40, %cst_13 {dimension_numbers = #tpu.dot_dimension_numbers<[1], [1], [0], [0], [0, 0, 1, 0], [], []>} : vector<8x8xf32>, vector<8x8xf32>, vector<8x8xf32> -> vector<8x8xf32>
    %cst_14 = arith.constant dense<0xFF800000> : vector<8xf32>
    %43 = vector.multi_reduction <maximumf>, %42, %cst_14 [1] : vector<8x8xf32> to vector<8xf32>
    %44 = vector.shape_cast %43 : vector<8xf32> to vector<8x1xf32>
    %45 = vector.broadcast %44 : vector<8x1xf32> to vector<8x8xf32>
    %46 = arith.subf %42, %45 : vector<8x8xf32>
    %47 = math.exp %46 : vector<8x8xf32>
    %cst_15 = arith.constant dense<0.000000e+00> : vector<8xf32>
    %48 = vector.multi_reduction <add>, %47, %cst_15 [1] : vector<8x8xf32> to vector<8xf32>
    %49 = vector.shape_cast %48 : vector<8xf32> to vector<8x1xf32>
    %50 = tpu.reciprocal %49 {approx = true} : vector<8x1xf32> -> vector<8x1xf32>
    %51 = vector.broadcast %50 : vector<8x1xf32> to vector<8x8xf32>
    %52 = arith.mulf %47, %51 : vector<8x8xf32>
    %cst_16 = arith.constant dense<0.000000e+00> : vector<8x8xf32>
    %53 = tpu.matmul %52, %41, %cst_16 {dimension_numbers = #tpu.dot_dimension_numbers<[1], [0], [0], [1], [0, 0, 1, 1], [], []>} : vector<8x8xf32>, vector<8x8xf32>, vector<8x8xf32> -> vector<8x8xf32>
    %54 = vector.extract_strided_slice %6 {offsets = [0, 24], sizes = [8, 8], strides = [1, 1]} : vector<8x32xf32> to vector<8x8xf32>
    %55 = vector.extract_strided_slice %7 {offsets = [0, 24], sizes = [8, 8], strides = [1, 1]} : vector<8x32xf32> to vector<8x8xf32>
    %56 = vector.extract_strided_slice %8 {offsets = [0, 24], sizes = [8, 8], strides = [1, 1]} : vector<8x32xf32> to vector<8x8xf32>
    %cst_17 = arith.constant dense<0.000000e+00> : vector<8x8xf32>
    %57 = tpu.matmul %54, %55, %cst_17 {dimension_numbers = #tpu.dot_dimension_numbers<[1], [1], [0], [0], [0, 0, 1, 0], [], []>} : vector<8x8xf32>, vector<8x8xf32>, vector<8x8xf32> -> vector<8x8xf32>
    %cst_18 = arith.constant dense<0xFF800000> : vector<8xf32>
    %58 = vector.multi_reduction <maximumf>, %57, %cst_18 [1] : vector<8x8xf32> to vector<8xf32>
    %59 = vector.shape_cast %58 : vector<8xf32> to vector<8x1xf32>
    %60 = vector.broadcast %59 : vector<8x1xf32> to vector<8x8xf32>
    %61 = arith.subf %57, %60 : vector<8x8xf32>
    %62 = math.exp %61 : vector<8x8xf32>
    %cst_19 = arith.constant dense<0.000000e+00> : vector<8xf32>
    %63 = vector.multi_reduction <add>, %62, %cst_19 [1] : vector<8x8xf32> to vector<8xf32>
    %64 = vector.shape_cast %63 : vector<8xf32> to vector<8x1xf32>
    %65 = tpu.reciprocal %64 {approx = true} : vector<8x1xf32> -> vector<8x1xf32>
    %66 = vector.broadcast %65 : vector<8x1xf32> to vector<8x8xf32>
    %67 = arith.mulf %62, %66 : vector<8x8xf32>
    %cst_20 = arith.constant dense<0.000000e+00> : vector<8x8xf32>
    %68 = tpu.matmul %67, %56, %cst_20 {dimension_numbers = #tpu.dot_dimension_numbers<[1], [0], [0], [1], [0, 0, 1, 1], [], []>} : vector<8x8xf32>, vector<8x8xf32>, vector<8x8xf32> -> vector<8x8xf32>
    %69 = vector.shape_cast %22 : vector<8x8xf32> to vector<1x8x8xf32>
    %70 = vector.shape_cast %37 : vector<8x8xf32> to vector<1x8x8xf32>
    %71 = vector.shape_cast %52 : vector<8x8xf32> to vector<1x8x8xf32>
    %72 = vector.shape_cast %67 : vector<8x8xf32> to vector<1x8x8xf32>
    %73 = tpu.concatenate %69, %70, %71, %72 in 0 : vector<1x8x8xf32>, vector<1x8x8xf32>, vector<1x8x8xf32>, vector<1x8x8xf32> -> vector<4x8x8xf32>
    %c0_21 = arith.constant 0 : index
    %c0_22 = arith.constant 0 : index
    %c0_23 = arith.constant 0 : index
    %c0_24 = arith.constant 0 : index
    %74 = vector.load %arg14[%c0_21, %c0_22, %c0_23, %c0_24] : memref<2x4x8x8xf32, #tpu.memory_space<vmem>>, vector<1x4x8x8xf32>
    %75 = vector.shape_cast %74 : vector<1x4x8x8xf32> to vector<4x8x8xf32>
    %76 = vector.shape_cast %73 : vector<4x8x8xf32> to vector<1x4x8x8xf32>
    tpu.vector_store %arg14[%c0_21, %c0_22, %c0_23, %c0_24], %76 {strides = array<i32>} : memref<2x4x8x8xf32, #tpu.memory_space<vmem>>, vector<1x4x8x8xf32>,
    %77 = tpu.concatenate %23, %38, %53, %68 in 1 : vector<8x8xf32>, vector<8x8xf32>, vector<8x8xf32>, vector<8x8xf32> -> vector<8x32xf32>
    %78 = vector.extract_strided_slice %5 {offsets = [8, 0], sizes = [8, 32], strides = [1, 1]} : vector<16x96xf32> to vector<8x32xf32>
    %79 = vector.extract_strided_slice %5 {offsets = [8, 32], sizes = [8, 32], strides = [1, 1]} : vector<16x96xf32> to vector<8x32xf32>
    %80 = vector.extract_strided_slice %5 {offsets = [8, 64], sizes = [8, 32], strides = [1, 1]} : vector<16x96xf32> to vector<8x32xf32>
    %81 = vector.extract_strided_slice %78 {offsets = [0, 0], sizes = [8, 8], strides = [1, 1]} : vector<8x32xf32> to vector<8x8xf32>
    %82 = vector.extract_strided_slice %79 {offsets = [0, 0], sizes = [8, 8], strides = [1, 1]} : vector<8x32xf32> to vector<8x8xf32>
    %83 = vector.extract_strided_slice %80 {offsets = [0, 0], sizes = [8, 8], strides = [1, 1]} : vector<8x32xf32> to vector<8x8xf32>
    %cst_25 = arith.constant dense<0.000000e+00> : vector<8x8xf32>
    %84 = tpu.matmul %81, %82, %cst_25 {dimension_numbers = #tpu.dot_dimension_numbers<[1], [1], [0], [0], [0, 0, 1, 0], [], []>} : vector<8x8xf32>, vector<8x8xf32>, vector<8x8xf32> -> vector<8x8xf32>
    %cst_26 = arith.constant dense<0xFF800000> : vector<8xf32>
    %85 = vector.multi_reduction <maximumf>, %84, %cst_26 [1] : vector<8x8xf32> to vector<8xf32>
    %86 = vector.shape_cast %85 : vector<8xf32> to vector<8x1xf32>
    %87 = vector.broadcast %86 : vector<8x1xf32> to vector<8x8xf32>
    %88 = arith.subf %84, %87 : vector<8x8xf32>
    %89 = math.exp %88 : vector<8x8xf32>
    %cst_27 = arith.constant dense<0.000000e+00> : vector<8xf32>
    %90 = vector.multi_reduction <add>, %89, %cst_27 [1] : vector<8x8xf32> to vector<8xf32>
    %91 = vector.shape_cast %90 : vector<8xf32> to vector<8x1xf32>
    %92 = tpu.reciprocal %91 {approx = true} : vector<8x1xf32> -> vector<8x1xf32>
    %93 = vector.broadcast %92 : vector<8x1xf32> to vector<8x8xf32>
    %94 = arith.mulf %89, %93 : vector<8x8xf32>
    %cst_28 = arith.constant dense<0.000000e+00> : vector<8x8xf32>
    %95 = tpu.matmul %94, %83, %cst_28 {dimension_numbers = #tpu.dot_dimension_numbers<[1], [0], [0], [1], [0, 0, 1, 1], [], []>} : vector<8x8xf32>, vector<8x8xf32>, vector<8x8xf32> -> vector<8x8xf32>
    %96 = vector.extract_strided_slice %78 {offsets = [0, 8], sizes = [8, 8], strides = [1, 1]} : vector<8x32xf32> to vector<8x8xf32>
    %97 = vector.extract_strided_slice %79 {offsets = [0, 8], sizes = [8, 8], strides = [1, 1]} : vector<8x32xf32> to vector<8x8xf32>
    %98 = vector.extract_strided_slice %80 {offsets = [0, 8], sizes = [8, 8], strides = [1, 1]} : vector<8x32xf32> to vector<8x8xf32>
    %cst_29 = arith.constant dense<0.000000e+00> : vector<8x8xf32>
    %99 = tpu.matmul %96, %97, %cst_29 {dimension_numbers = #tpu.dot_dimension_numbers<[1], [1], [0], [0], [0, 0, 1, 0], [], []>} : vector<8x8xf32>, vector<8x8xf32>, vector<8x8xf32> -> vector<8x8xf32>
    %cst_30 = arith.constant dense<0xFF800000> : vector<8xf32>
    %100 = vector.multi_reduction <maximumf>, %99, %cst_30 [1] : vector<8x8xf32> to vector<8xf32>
    %101 = vector.shape_cast %100 : vector<8xf32> to vector<8x1xf32>
    %102 = vector.broadcast %101 : vector<8x1xf32> to vector<8x8xf32>
    %103 = arith.subf %99, %102 : vector<8x8xf32>
    %104 = math.exp %103 : vector<8x8xf32>
    %cst_31 = arith.constant dense<0.000000e+00> : vector<8xf32>
    %105 = vector.multi_reduction <add>, %104, %cst_31 [1] : vector<8x8xf32> to vector<8xf32>
    %106 = vector.shape_cast %105 : vector<8xf32> to vector<8x1xf32>
    %107 = tpu.reciprocal %106 {approx = true} : vector<8x1xf32> -> vector<8x1xf32>
    %108 = vector.broadcast %107 : vector<8x1xf32> to vector<8x8xf32>
    %109 = arith.mulf %104, %108 : vector<8x8xf32>
    %cst_32 = arith.constant dense<0.000000e+00> : vector<8x8xf32>
    %110 = tpu.matmul %109, %98, %cst_32 {dimension_numbers = #tpu.dot_dimension_numbers<[1], [0], [0], [1], [0, 0, 1, 1], [], []>} : vector<8x8xf32>, vector<8x8xf32>, vector<8x8xf32> -> vector<8x8xf32>
    %111 = vector.extract_strided_slice %78 {offsets = [0, 16], sizes = [8, 8], strides = [1, 1]} : vector<8x32xf32> to vector<8x8xf32>
    %112 = vector.extract_strided_slice %79 {offsets = [0, 16], sizes = [8, 8], strides = [1, 1]} : vector<8x32xf32> to vector<8x8xf32>
    %113 = vector.extract_strided_slice %80 {offsets = [0, 16], sizes = [8, 8], strides = [1, 1]} : vector<8x32xf32> to vector<8x8xf32>
    %cst_33 = arith.constant dense<0.000000e+00> : vector<8x8xf32>
    %114 = tpu.matmul %111, %112, %cst_33 {dimension_numbers = #tpu.dot_dimension_numbers<[1], [1], [0], [0], [0, 0, 1, 0], [], []>} : vector<8x8xf32>, vector<8x8xf32>, vector<8x8xf32> -> vector<8x8xf32>
    %cst_34 = arith.constant dense<0xFF800000> : vector<8xf32>
    %115 = vector.multi_reduction <maximumf>, %114, %cst_34 [1] : vector<8x8xf32> to vector<8xf32>
    %116 = vector.shape_cast %115 : vector<8xf32> to vector<8x1xf32>
    %117 = vector.broadcast %116 : vector<8x1xf32> to vector<8x8xf32>
    %118 = arith.subf %114, %117 : vector<8x8xf32>
    %119 = math.exp %118 : vector<8x8xf32>
    %cst_35 = arith.constant dense<0.000000e+00> : vector<8xf32>
    %120 = vector.multi_reduction <add>, %119, %cst_35 [1] : vector<8x8xf32> to vector<8xf32>
    %121 = vector.shape_cast %120 : vector<8xf32> to vector<8x1xf32>
    %122 = tpu.reciprocal %121 {approx = true} : vector<8x1xf32> -> vector<8x1xf32>
    %123 = vector.broadcast %122 : vector<8x1xf32> to vector<8x8xf32>
    %124 = arith.mulf %119, %123 : vector<8x8xf32>
    %cst_36 = arith.constant dense<0.000000e+00> : vector<8x8xf32>
    %125 = tpu.matmul %124, %113, %cst_36 {dimension_numbers = #tpu.dot_dimension_numbers<[1], [0], [0], [1], [0, 0, 1, 1], [], []>} : vector<8x8xf32>, vector<8x8xf32>, vector<8x8xf32> -> vector<8x8xf32>
    %126 = vector.extract_strided_slice %78 {offsets = [0, 24], sizes = [8, 8], strides = [1, 1]} : vector<8x32xf32> to vector<8x8xf32>
    %127 = vector.extract_strided_slice %79 {offsets = [0, 24], sizes = [8, 8], strides = [1, 1]} : vector<8x32xf32> to vector<8x8xf32>
    %128 = vector.extract_strided_slice %80 {offsets = [0, 24], sizes = [8, 8], strides = [1, 1]} : vector<8x32xf32> to vector<8x8xf32>
    %cst_37 = arith.constant dense<0.000000e+00> : vector<8x8xf32>
    %129 = tpu.matmul %126, %127, %cst_37 {dimension_numbers = #tpu.dot_dimension_numbers<[1], [1], [0], [0], [0, 0, 1, 0], [], []>} : vector<8x8xf32>, vector<8x8xf32>, vector<8x8xf32> -> vector<8x8xf32>
    %cst_38 = arith.constant dense<0xFF800000> : vector<8xf32>
    %130 = vector.multi_reduction <maximumf>, %129, %cst_38 [1] : vector<8x8xf32> to vector<8xf32>
    %131 = vector.shape_cast %130 : vector<8xf32> to vector<8x1xf32>
    %132 = vector.broadcast %131 : vector<8x1xf32> to vector<8x8xf32>
    %133 = arith.subf %129, %132 : vector<8x8xf32>
    %134 = math.exp %133 : vector<8x8xf32>
    %cst_39 = arith.constant dense<0.000000e+00> : vector<8xf32>
    %135 = vector.multi_reduction <add>, %134, %cst_39 [1] : vector<8x8xf32> to vector<8xf32>
    %136 = vector.shape_cast %135 : vector<8xf32> to vector<8x1xf32>
    %137 = tpu.reciprocal %136 {approx = true} : vector<8x1xf32> -> vector<8x1xf32>
    %138 = vector.broadcast %137 : vector<8x1xf32> to vector<8x8xf32>
    %139 = arith.mulf %134, %138 : vector<8x8xf32>
    %cst_40 = arith.constant dense<0.000000e+00> : vector<8x8xf32>
    %140 = tpu.matmul %139, %128, %cst_40 {dimension_numbers = #tpu.dot_dimension_numbers<[1], [0], [0], [1], [0, 0, 1, 1], [], []>} : vector<8x8xf32>, vector<8x8xf32>, vector<8x8xf32> -> vector<8x8xf32>
    %141 = vector.shape_cast %94 : vector<8x8xf32> to vector<1x8x8xf32>
    %142 = vector.shape_cast %109 : vector<8x8xf32> to vector<1x8x8xf32>
    %143 = vector.shape_cast %124 : vector<8x8xf32> to vector<1x8x8xf32>
    %144 = vector.shape_cast %139 : vector<8x8xf32> to vector<1x8x8xf32>
    %145 = tpu.concatenate %141, %142, %143, %144 in 0 : vector<1x8x8xf32>, vector<1x8x8xf32>, vector<1x8x8xf32>, vector<1x8x8xf32> -> vector<4x8x8xf32>
    %c1 = arith.constant 1 : index
    %c0_41 = arith.constant 0 : index
    %c0_42 = arith.constant 0 : index
    %c0_43 = arith.constant 0 : index
    %146 = vector.load %arg14[%c1, %c0_41, %c0_42, %c0_43] : memref<2x4x8x8xf32, #tpu.memory_space<vmem>>, vector<1x4x8x8xf32>
    %147 = vector.shape_cast %146 : vector<1x4x8x8xf32> to vector<4x8x8xf32>
    %148 = vector.shape_cast %145 : vector<4x8x8xf32> to vector<1x4x8x8xf32>
    tpu.vector_store %arg14[%c1, %c0_41, %c0_42, %c0_43], %148 {strides = array<i32>} : memref<2x4x8x8xf32, #tpu.memory_space<vmem>>, vector<1x4x8x8xf32>,
    %149 = tpu.concatenate %95, %110, %125, %140 in 1 : vector<8x8xf32>, vector<8x8xf32>, vector<8x8xf32>, vector<8x8xf32> -> vector<8x32xf32>
    %150 = tpu.concatenate %77, %149 in 0 : vector<8x32xf32>, vector<8x32xf32> -> vector<16x32xf32>
    %c0_44 = arith.constant 0 : index
    %c0_45 = arith.constant 0 : index
    %151 = vector.load %arg3[%c0_44, %c0_45] : memref<32x32xf32, #tpu.memory_space<vmem>>, vector<32x32xf32>
    %cst_46 = arith.constant dense<0.000000e+00> : vector<16x32xf32>
    %152 = tpu.matmul %150, %151, %cst_46 {dimension_numbers = #tpu.dot_dimension_numbers<[1], [0], [0], [1], [0, 0, 1, 1], [], []>} : vector<16x32xf32>, vector<32x32xf32>, vector<16x32xf32> -> vector<16x32xf32>
    %c0_47 = arith.constant 0 : index
    %c0_48 = arith.constant 0 : index
    %153 = vector.load %arg4[%c0_47, %c0_48] : memref<1x32xf32, #tpu.memory_space<vmem>>, vector<1x32xf32>
    %154 = vector.broadcast %153 : vector<1x32xf32> to vector<16x32xf32>
    %155 = arith.addf %152, %154 : vector<16x32xf32>
    %156 = arith.addf %0, %155 : vector<16x32xf32>
    %c0_49 = arith.constant 0 : index
    %c0_50 = arith.constant 0 : index
    %157 = vector.load %arg5[%c0_49, %c0_50] : memref<1x32xf32, #tpu.memory_space<vmem>>, vector<1x32xf32>
    %c0_51 = arith.constant 0 : index
    %c0_52 = arith.constant 0 : index
    %158 = vector.load %arg6[%c0_51, %c0_52] : memref<1x32xf32, #tpu.memory_space<vmem>>, vector<1x32xf32>
    %cst_53 = arith.constant dense<0.000000e+00> : vector<16xf32>
    %159 = vector.multi_reduction <add>, %156, %cst_53 [1] : vector<16x32xf32> to vector<16xf32>
    %160 = vector.shape_cast %159 : vector<16xf32> to vector<16x1xf32>
    %cst_54 = arith.constant 3.200000e+01 : f32
    %161 = vector.broadcast %cst_54 : f32 to vector<16x1xf32>
    %162 = arith.divf %160, %161 : vector<16x1xf32>
    %163 = vector.broadcast %162 : vector<16x1xf32> to vector<16x32xf32>
    %164 = arith.subf %156, %163 : vector<16x32xf32>
    %165 = arith.mulf %164, %164 : vector<16x32xf32>
    %cst_55 = arith.constant dense<0.000000e+00> : vector<16xf32>
    %166 = vector.multi_reduction <add>, %165, %cst_55 [1] : vector<16x32xf32> to vector<16xf32>
    %167 = vector.shape_cast %166 : vector<16xf32> to vector<16x1xf32>
    %cst_56 = arith.constant 3.200000e+01 : f32
    %168 = vector.broadcast %cst_56 : f32 to vector<16x1xf32>
    %169 = arith.divf %167, %168 : vector<16x1xf32>
    %170 = vector.broadcast %162 : vector<16x1xf32> to vector<16x32xf32>
    %171 = arith.subf %156, %170 : vector<16x32xf32>
    %cst_57 = arith.constant 9.99999974E-6 : f32
    %172 = vector.broadcast %cst_57 : f32 to vector<16x1xf32>
    %173 = arith.addf %169, %172 : vector<16x1xf32>
    %174 = math.rsqrt %173 : vector<16x1xf32>
    %175 = vector.broadcast %174 : vector<16x1xf32> to vector<16x32xf32>
    %176 = arith.mulf %171, %175 : vector<16x32xf32>
    %177 = vector.broadcast %157 : vector<1x32xf32> to vector<16x32xf32>
    %178 = arith.mulf %176, %177 : vector<16x32xf32>
    %179 = vector.broadcast %158 : vector<1x32xf32> to vector<16x32xf32>
    %180 = arith.addf %178, %179 : vector<16x32xf32>
    %c0_58 = arith.constant 0 : index
    %c0_59 = arith.constant 0 : index
    %181 = vector.load %arg7[%c0_58, %c0_59] : memref<32x64xf32, #tpu.memory_space<vmem>>, vector<32x64xf32>
    %cst_60 = arith.constant dense<0.000000e+00> : vector<16x64xf32>
    %182 = tpu.matmul %180, %181, %cst_60 {dimension_numbers = #tpu.dot_dimension_numbers<[1], [0], [0], [1], [0, 0, 1, 1], [], []>} : vector<16x32xf32>, vector<32x64xf32>, vector<16x64xf32> -> vector<16x64xf32>
    %c0_61 = arith.constant 0 : index
    %c0_62 = arith.constant 0 : index
    %183 = vector.load %arg8[%c0_61, %c0_62] : memref<1x64xf32, #tpu.memory_space<vmem>>, vector<1x64xf32>
    %184 = vector.broadcast %183 : vector<1x64xf32> to vector<16x64xf32>
    %185 = arith.addf %182, %184 : vector<16x64xf32>
    %cst_63 = arith.constant 5.000000e-01 : f32
    %186 = vector.broadcast %cst_63 : f32 to vector<16x64xf32>
    %187 = arith.mulf %186, %185 : vector<16x64xf32>
    %cst_64 = arith.constant 0.707106769 : f32
    %188 = vector.broadcast %cst_64 : f32 to vector<16x64xf32>
    %189 = arith.mulf %185, %188 : vector<16x64xf32>
    %190 = math.erf %189 : vector<16x64xf32>
    %cst_65 = arith.constant 1.000000e+00 : f32
    %191 = vector.broadcast %cst_65 : f32 to vector<16x64xf32>
    %192 = arith.addf %191, %190 : vector<16x64xf32>
    %193 = arith.mulf %187, %192 : vector<16x64xf32>
    %c0_66 = arith.constant 0 : index
    %c0_67 = arith.constant 0 : index
    %194 = vector.load %arg9[%c0_66, %c0_67] : memref<64x32xf32, #tpu.memory_space<vmem>>, vector<64x32xf32>
    %cst_68 = arith.constant dense<0.000000e+00> : vector<16x32xf32>
    %195 = tpu.matmul %193, %194, %cst_68 {dimension_numbers = #tpu.dot_dimension_numbers<[1], [0], [0], [1], [0, 0, 1, 1], [], []>} : vector<16x64xf32>, vector<64x32xf32>, vector<16x32xf32> -> vector<16x32xf32>
    %c0_69 = arith.constant 0 : index
    %c0_70 = arith.constant 0 : index
    %196 = vector.load %arg10[%c0_69, %c0_70] : memref<1x32xf32, #tpu.memory_space<vmem>>, vector<1x32xf32>
    %197 = vector.broadcast %196 : vector<1x32xf32> to vector<16x32xf32>
    %198 = arith.addf %195, %197 : vector<16x32xf32>
    %199 = arith.addf %180, %198 : vector<16x32xf32>
    %c0_71 = arith.constant 0 : index
    %c0_72 = arith.constant 0 : index
    %200 = vector.load %arg11[%c0_71, %c0_72] : memref<1x32xf32, #tpu.memory_space<vmem>>, vector<1x32xf32>
    %c0_73 = arith.constant 0 : index
    %c0_74 = arith.constant 0 : index
    %201 = vector.load %arg12[%c0_73, %c0_74] : memref<1x32xf32, #tpu.memory_space<vmem>>, vector<1x32xf32>
    %cst_75 = arith.constant dense<0.000000e+00> : vector<16xf32>
    %202 = vector.multi_reduction <add>, %199, %cst_75 [1] : vector<16x32xf32> to vector<16xf32>
    %203 = vector.shape_cast %202 : vector<16xf32> to vector<16x1xf32>
    %cst_76 = arith.constant 3.200000e+01 : f32
    %204 = vector.broadcast %cst_76 : f32 to vector<16x1xf32>
    %205 = arith.divf %203, %204 : vector<16x1xf32>
    %206 = vector.broadcast %205 : vector<16x1xf32> to vector<16x32xf32>
    %207 = arith.subf %199, %206 : vector<16x32xf32>
    %208 = arith.mulf %207, %207 : vector<16x32xf32>
    %cst_77 = arith.constant dense<0.000000e+00> : vector<16xf32>
    %209 = vector.multi_reduction <add>, %208, %cst_77 [1] : vector<16x32xf32> to vector<16xf32>
    %210 = vector.shape_cast %209 : vector<16xf32> to vector<16x1xf32>
    %cst_78 = arith.constant 3.200000e+01 : f32
    %211 = vector.broadcast %cst_78 : f32 to vector<16x1xf32>
    %212 = arith.divf %210, %211 : vector<16x1xf32>
    %213 = vector.broadcast %205 : vector<16x1xf32> to vector<16x32xf32>
    %214 = arith.subf %199, %213 : vector<16x32xf32>
    %cst_79 = arith.constant 9.99999974E-6 : f32
    %215 = vector.broadcast %cst_79 : f32 to vector<16x1xf32>
    %216 = arith.addf %212, %215 : vector<16x1xf32>
    %217 = math.rsqrt %216 : vector<16x1xf32>
    %218 = vector.broadcast %217 : vector<16x1xf32> to vector<16x32xf32>
    %219 = arith.mulf %214, %218 : vector<16x32xf32>
    %220 = vector.broadcast %200 : vector<1x32xf32> to vector<16x32xf32>
    %221 = arith.mulf %219, %220 : vector<16x32xf32>
    %222 = vector.broadcast %201 : vector<1x32xf32> to vector<16x32xf32>
    %223 = arith.addf %221, %222 : vector<16x32xf32>
    %c0_80 = arith.constant 0 : index
    %c0_81 = arith.constant 0 : index
    %224 = vector.load %arg13[%c0_80, %c0_81] : memref<16x32xf32, #tpu.memory_space<vmem>>, vector<16x32xf32>
    tpu.vector_store %arg13[%c0_80, %c0_81], %223 {strides = array<i32>} : memref<16x32xf32, #tpu.memory_space<vmem>>, vector<16x32xf32>,
    return
  }
}

</mosaic_0001>

<llo_original>
// kernel: transformer_layer_forward.1
$region0: #{transformer_layer_forward.1}
  #allocation0 [shape = 'u32[]', space=smem, size = 0x4, offset = 0x4, fixed_abs, tag = 'smem constant byte address 0x4 - core index']
  #allocation1 [shape = 'u32[72,128]{1,0:T(1,128)}', space=vmem, size = 0x9000, scoped, tag = 'internal scratch']
  %s0 = inlined_call_operand.vmem [shape: f32[16,32], index: 0, kind: input, shape index: {}]
  %s1 = inlined_call_operand.vmem [shape: f32[32,96], index: 1, kind: input, shape index: {}]
  %s2 = inlined_call_operand.vmem [shape: f32[1,96], index: 2, kind: input, shape index: {}]
  %s3 = inlined_call_operand.vmem [shape: f32[32,32], index: 3, kind: input, shape index: {}]
  %s4 = inlined_call_operand.vmem [shape: f32[1,32], index: 4, kind: input, shape index: {}]
  %s5 = inlined_call_operand.vmem [shape: f32[1,32], index: 5, kind: input, shape index: {}]
  %s6 = inlined_call_operand.vmem [shape: f32[1,32], index: 6, kind: input, shape index: {}]
  %s7 = inlined_call_operand.vmem [shape: f32[32,64], index: 7, kind: input, shape index: {}]
  %s8 = inlined_call_operand.vmem [shape: f32[1,64], index: 8, kind: input, shape index: {}]
  %s9 = inlined_call_operand.vmem [shape: f32[64,32], index: 9, kind: input, shape index: {}]
  %s10 = inlined_call_operand.hbm [shape: f32[1,32], index: 10, kind: input, shape index: {}]
  %s11 = inlined_call_operand.vmem [shape: f32[1,32], index: 11, kind: input, shape index: {}]
  %s12 = inlined_call_operand.vmem [shape: f32[1,32], index: 12, kind: input, shape index: {}]
  %s13 = inlined_call_operand.vmem [shape: f32[16,32], index: 13, kind: output, shape index: {0}]
  %s14 = inlined_call_operand.hbm [shape: f32[2,4,8,8], index: 14, kind: output, shape index: {1}]
  %15 = xla_tuple %s13, %s14
  %s16 = sld [smem:[#allocation0]]
  $region74: #{transformer_layer_forward.1} parent=0
    _
  %s18 = ssub.s32 1, %s16
  %s19 = scalar_select 0, %s18, %s16
  $region1: #{transformer_layer_forward.1} parent=0
    #allocation2 [shape = 'u8[512]{0}', space=vmem, size = 0x400, scoped, tag = 'input window, operand 10, single buffered']
    #allocation3 [shape = 's32[1]{0}', space=sflag, size = 0x4, scoped, tag = 'scoped memory for transformer_layer_forward.1']
    #allocation4 [shape = 's32[1]{0}', space=sflag, size = 0x4, scoped, tag = 'scoped memory for transformer_layer_forward.1']
    #allocation5 [shape = 'u8[32768]{0}', space=vmem, size = 0x8000, scoped, tag = 'output window, operand 1, single buffered']
    %20 = vsyncpa [#allocation3], 0
    %21 = vsyncpa [#allocation4], 0
    // Predicated region
    $region2: #{transformer_layer_forward.1} parent=1 // pred_check
      _
    $region3: #{transformer_layer_forward.1} parent=1 // pred_check_branch
      %23 = sbr.rel (0) target = $region5
    $region4: #{transformer_layer_forward.1} parent=1 // pred_region
      _
    $region5: #{transformer_layer_forward.1} parent=1 // pred_fallthru
      _
    // Predicated region
    $region6: #{transformer_layer_forward.1} parent=1 // pred_check
      _
    $region7: #{transformer_layer_forward.1} parent=1 // pred_check_branch
      %25 = sbr.rel (0) target = $region9
    $region8: #{transformer_layer_forward.1} parent=1 // pred_region
      _
    $region9: #{transformer_layer_forward.1} parent=1 // pred_fallthru
      _
    // Predicated region
    $region10: #{transformer_layer_forward.1} parent=1 // pred_check
      _
    $region11: #{transformer_layer_forward.1} parent=1 // pred_check_branch
      %27 = sbr.rel (0) target = $region13
    $region12: #{transformer_layer_forward.1} parent=1 // pred_region
      _
    $region13: #{transformer_layer_forward.1} parent=1 // pred_fallthru
      _
    // Predicated region
    $region14: #{transformer_layer_forward.1} parent=1 // pred_check
      _
    $region15: #{transformer_layer_forward.1} parent=1 // pred_check_branch
      %29 = sbr.rel (0) target = $region17
    $region16: #{transformer_layer_forward.1} parent=1 // pred_region
      _
    $region17: #{transformer_layer_forward.1} parent=1 // pred_fallthru
      _
    // Predicated region
    $region18: #{transformer_layer_forward.1} parent=1 // pred_check
      _
    $region19: #{transformer_layer_forward.1} parent=1 // pred_check_branch
      %31 = sbr.rel (0) target = $region21
    $region20: #{transformer_layer_forward.1} parent=1 // pred_region
      _
    $region21: #{transformer_layer_forward.1} parent=1 // pred_fallthru
      _
    // Predicated region
    $region22: #{transformer_layer_forward.1} parent=1 // pred_check
      _
    $region23: #{transformer_layer_forward.1} parent=1 // pred_check_branch
      %33 = sbr.rel (0) target = $region25
    $region24: #{transformer_layer_forward.1} parent=1 // pred_region
      _
    $region25: #{transformer_layer_forward.1} parent=1 // pred_fallthru
      _
    // Predicated region
    $region26: #{transformer_layer_forward.1} parent=1 // pred_check
      _
    $region27: #{transformer_layer_forward.1} parent=1 // pred_check_branch
      %35 = sbr.rel (0) target = $region29
    $region28: #{transformer_layer_forward.1} parent=1 // pred_region
      _
    $region29: #{transformer_layer_forward.1} parent=1 // pred_fallthru
      _
    // Predicated region
    $region30: #{transformer_layer_forward.1} parent=1 // pred_check
      _
    $region31: #{transformer_layer_forward.1} parent=1 // pred_check_branch
      %37 = sbr.rel (0) target = $region33
    $region32: #{transformer_layer_forward.1} parent=1 // pred_region
      _
    $region33: #{transformer_layer_forward.1} parent=1 // pred_fallthru
      _
    // Predicated region
    $region34: #{transformer_layer_forward.1} parent=1 // pred_check
      _
    $region35: #{transformer_layer_forward.1} parent=1 // pred_check_branch
      %39 = sbr.rel (0) target = $region37
    $region36: #{transformer_layer_forward.1} parent=1 // pred_region
      _
    $region37: #{transformer_layer_forward.1} parent=1 // pred_fallthru
      _
    // Predicated region
    $region38: #{transformer_layer_forward.1} parent=1 // pred_check
      _
    $region39: #{transformer_layer_forward.1} parent=1 // pred_check_branch
      %41 = sbr.rel (0) target = $region41
    $region40: #{transformer_layer_forward.1} parent=1 // pred_region
      _
    $region41: #{transformer_layer_forward.1} parent=1 // pred_fallthru
      _
    // Predicated region
    $region42: #{transformer_layer_forward.1} parent=1 // pred_check
      _
    $region43: #{transformer_layer_forward.1} parent=1 // pred_check_branch
      %43 = sbr.rel (0) target = $region45
    $region44: #{transformer_layer_forward.1} parent=1 // pred_region
      %45 = vsyncadd [#allocation3], 0
      %s47 = sshll.u32 %s10, 4
      %s48 = int_to_ptr.hbm [resolvable:$true] %s47
      %s49 = sshll.u32 [#allocation2], 4
      %s50 = int_to_ptr.vmem [resolvable:$true] %s49
      %52 = dma.hbm_to_vmem [thread:$0]  %s48, 16, %s50, [#allocation3]
    $region45: #{transformer_layer_forward.1} parent=1 // pred_fallthru
      _
    // Predicated region
    $region46: #{transformer_layer_forward.1} parent=1 // pred_check
      _
    $region47: #{transformer_layer_forward.1} parent=1 // pred_check_branch
      %54 = sbr.rel (0) target = $region49
    $region48: #{transformer_layer_forward.1} parent=1 // pred_region
      _
    $region49: #{transformer_layer_forward.1} parent=1 // pred_fallthru
      _
    // Predicated region
    $region50: #{transformer_layer_forward.1} parent=1 // pred_check
      _
    $region51: #{transformer_layer_forward.1} parent=1 // pred_check_branch
      %56 = sbr.rel (0) target = $region53
    $region52: #{transformer_layer_forward.1} parent=1 // pred_region
      _
    $region53: #{transformer_layer_forward.1} parent=1 // pred_fallthru
      _
    // Predicated region
    $region54: #{transformer_layer_forward.1} parent=1 // pred_check
      _
    $region55: #{transformer_layer_forward.1} parent=1 // pred_check_branch
      %58 = sbr.rel (0) target = $region57
    $region56: #{transformer_layer_forward.1} parent=1 // pred_region
      %60 = dma.done [#allocation3], 16
    $region57: #{transformer_layer_forward.1} parent=1 // pred_fallthru
      _
    %v61 = vld [vmem:[%s0] sm:$0xff]
    %v62 = vld [vmem:[%s0 + $0x8] sm:$0xff]
    %v63 = vld [vmem:[%s1] sm:$0xff]
    %v64 = vld [vmem:[%s1 + $0x8] sm:$0xff]
    %v65 = vld [vmem:[%s1 + $0x10] sm:$0xff]
    %v66 = vld [vmem:[%s1 + $0x18] sm:$0xff]
    %v67 = vld [vmem:[%s2] sm:$0x1]
    %v69 = vperm.slane %v67, 0
    %vm71 = vcmask 261120
    %v73 = vsel %vm71, %v61, 0
    %v76 = vsel %vm71, %v62, 0
    %78 = vmatpush.msra.mxu0 0.0
    %79 = vmatpush.msra.mxu0 0.0
    %80 = vmatpush.msra.mxu0 0.0
    %81 = vmatpush.msra.mxu0 0.0
    %82 = vmatpush.msra.mxu0 0.0
    %83 = vmatpush.msra.mxu0 0.0
    %84 = vmatpush.msra.mxu0 0.0
    %85 = vmatpush.msra.mxu0 0.0
    %86 = vmatpush.msra.mxu0 0.0
    %87 = vmatpush.msra.mxu0 0.0
    %88 = vmatpush.msra.mxu0 0.0
    %89 = vmatpush.msra.mxu0 0.0
    %90 = vmatpush.msra.mxu0 %v66
    %91 = vmatpush.msra.mxu0 %v65
    %92 = vmatpush.msra.mxu0 %v64
    %93 = vmatpush.msra.mxu0 %v63
    %94 = vmatmul.f32.gmra.mxu0 %v73
    %v95 = vpop.f32.mrf.mxu0
    %v96 = vadd.f32 %v69, %v95
    %97 = vmatmul.f32.gmra.mxu0 %v76
    %v98 = vpop.f32.mrf.mxu0
    %v99 = vadd.f32 %v69, %v98
    %100 = vdwg.mxu0
    %102 = vrot.lane.b32.xlu0 %v96, 96
    %v103 = vpop.permute.xlu0 %102
    %vm104 = vcmask 64512
    %v105 = vsel %vm104, %v96, 0
    %v107 = vsel %vm104, %v103, 0
    %109 = vmatpush.xpose.msra.mxu0 0.0
    %110 = vmatpush.xpose.msra.mxu0 0.0
    %111 = vmatpush.xpose.msra.mxu0 0.0
    %112 = vmatpush.xpose.msra.mxu0 0.0
    %113 = vmatpush.xpose.msra.mxu0 0.0
    %114 = vmatpush.xpose.msra.mxu0 0.0
    %115 = vmatpush.xpose.msra.mxu0 0.0
    %116 = vmatpush.xpose.msra.mxu0 0.0
    %117 = vmatpush.xpose.msra.mxu0 0.0
    %118 = vmatpush.xpose.msra.mxu0 0.0
    %119 = vmatpush.xpose.msra.mxu0 0.0
    %120 = vmatpush.xpose.msra.mxu0 0.0
    %121 = vmatpush.xpose.msra.mxu0 0.0
    %122 = vmatpush.xpose.msra.mxu0 0.0
    %123 = vmatpush.xpose.msra.mxu0 0.0
    %124 = vmatpush.xpose.msra.mxu0 %v107
    %125 = vmatmul.f32.gmra.mxu0 %v105
    %v126 = vpop.f32.mrf.mxu0
    %v127 = vadd.f32 0.0, %v126
    %128 = vdwg.mxu0
    %v129 = vsel %vm104, %v127, -inf
    %130 = vmax.xlane.f32.xlu0 %v129
    %v131 = vpop.xlane.xlu0 %130
    %v132 = vsub.f32 %v127, %v131
    %v133 = vmul.f32 %v132, 1.442695
    %v134 = vpow.pop %v133
    %v135 = vsel %vm104, %v134, 0.0
    %136 = vadd.xlane.f32.xlu0 %v135
    %v137 = vpop.xlane.xlu0 %136
    %v138 = vrcp.pop %v137
    %v139 = vmul.f32 %v134, %v138
    %140 = vrot.lane.b32.xlu0 %v96, 64
    %v141 = vpop.permute.xlu0 %140
    %v144 = vsel %vm104, %v139, 0
    %146 = vmatpush.msra.mxu0 0.0
    %147 = vmatpush.msra.mxu0 0.0
    %148 = vmatpush.msra.mxu0 0.0
    %149 = vmatpush.msra.mxu0 0.0
    %150 = vmatpush.msra.mxu0 0.0
    %151 = vmatpush.msra.mxu0 0.0
    %152 = vmatpush.msra.mxu0 0.0
    %153 = vmatpush.msra.mxu0 0.0
    %154 = vmatpush.msra.mxu0 0.0
    %155 = vmatpush.msra.mxu0 0.0
    %156 = vmatpush.msra.mxu0 0.0
    %157 = vmatpush.msra.mxu0 0.0
    %158 = vmatpush.msra.mxu0 0.0
    %159 = vmatpush.msra.mxu0 0.0
    %160 = vmatpush.msra.mxu0 0.0
    %161 = vmatpush.msra.mxu0 %v141
    %162 = vmatmul.f32.gmra.mxu0 %v144
    %v163 = vpop.f32.mrf.mxu0
    %v164 = vadd.f32 0.0, %v163
    %165 = vdwg.mxu0
    %166 = vrot.lane.b32.xlu0 %v96, 120
    %v167 = vpop.permute.xlu0 %166
    %168 = vrot.lane.b32.xlu0 %v96, 88
    %v169 = vpop.permute.xlu0 %168
    %v170 = vsel %vm104, %v167, 0
    %v172 = vsel %vm104, %v169, 0
    %174 = vmatpush.xpose.msra.mxu0 0.0
    %175 = vmatpush.xpose.msra.mxu0 0.0
    %176 = vmatpush.xpose.msra.mxu0 0.0
    %177 = vmatpush.xpose.msra.mxu0 0.0
    %178 = vmatpush.xpose.msra.mxu0 0.0
    %179 = vmatpush.xpose.msra.mxu0 0.0
    %180 = vmatpush.xpose.msra.mxu0 0.0
    %181 = vmatpush.xpose.msra.mxu0 0.0
    %182 = vmatpush.xpose.msra.mxu0 0.0
    %183 = vmatpush.xpose.msra.mxu0 0.0
    %184 = vmatpush.xpose.msra.mxu0 0.0
    %185 = vmatpush.xpose.msra.mxu0 0.0
    %186 = vmatpush.xpose.msra.mxu0 0.0
    %187 = vmatpush.xpose.msra.mxu0 0.0
    %188 = vmatpush.xpose.msra.mxu0 0.0
    %189 = vmatpush.xpose.msra.mxu0 %v172
    %190 = vmatmul.f32.gmra.mxu0 %v170
    %v191 = vpop.f32.mrf.mxu0
    %v192 = vadd.f32 0.0, %v191
    %193 = vdwg.mxu0
    %v194 = vsel %vm104, %v192, -inf
    %195 = vmax.xlane.f32.xlu0 %v194
    %v196 = vpop.xlane.xlu0 %195
    %v197 = vsub.f32 %v192, %v196
    %v198 = vmul.f32 %v197, 1.442695
    %v199 = vpow.pop %v198
    %v200 = vsel %vm104, %v199, 0.0
    %201 = vadd.xlane.f32.xlu0 %v200
    %v202 = vpop.xlane.xlu0 %201
    %v203 = vrcp.pop %v202
    %v204 = vmul.f32 %v199, %v203
    %205 = vrot.lane.b32.xlu0 %v96, 56
    %v206 = vpop.permute.xlu0 %205
    %v209 = vsel %vm104, %v204, 0
    %211 = vmatpush.msra.mxu0 0.0
    %212 = vmatpush.msra.mxu0 0.0
    %213 = vmatpush.msra.mxu0 0.0
    %214 = vmatpush.msra.mxu0 0.0
    %215 = vmatpush.msra.mxu0 0.0
    %216 = vmatpush.msra.mxu0 0.0
    %217 = vmatpush.msra.mxu0 0.0
    %218 = vmatpush.msra.mxu0 0.0
    %219 = vmatpush.msra.mxu0 0.0
    %220 = vmatpush.msra.mxu0 0.0
    %221 = vmatpush.msra.mxu0 0.0
    %222 = vmatpush.msra.mxu0 0.0
    %223 = vmatpush.msra.mxu0 0.0
    %224 = vmatpush.msra.mxu0 0.0
    %225 = vmatpush.msra.mxu0 0.0
    %226 = vmatpush.msra.mxu0 %v206
    %227 = vmatmul.f32.gmra.mxu0 %v209
    %v228 = vpop.f32.mrf.mxu0
    %v229 = vadd.f32 0.0, %v228
    %230 = vdwg.mxu0
    %231 = vrot.lane.b32.xlu0 %v96, 112
    %v232 = vpop.permute.xlu0 %231
    %233 = vrot.lane.b32.xlu0 %v96, 80
    %v234 = vpop.permute.xlu0 %233
    %v235 = vsel %vm104, %v232, 0
    %v237 = vsel %vm104, %v234, 0
    %239 = vmatpush.xpose.msra.mxu0 0.0
    %240 = vmatpush.xpose.msra.mxu0 0.0
    %241 = vmatpush.xpose.msra.mxu0 0.0
    %242 = vmatpush.xpose.msra.mxu0 0.0
    %243 = vmatpush.xpose.msra.mxu0 0.0
    %244 = vmatpush.xpose.msra.mxu0 0.0
    %245 = vmatpush.xpose.msra.mxu0 0.0
    %246 = vmatpush.xpose.msra.mxu0 0.0
    %247 = vmatpush.xpose.msra.mxu0 0.0
    %248 = vmatpush.xpose.msra.mxu0 0.0
    %249 = vmatpush.xpose.msra.mxu0 0.0
    %250 = vmatpush.xpose.msra.mxu0 0.0
    %251 = vmatpush.xpose.msra.mxu0 0.0
    %252 = vmatpush.xpose.msra.mxu0 0.0
    %253 = vmatpush.xpose.msra.mxu0 0.0
    %254 = vmatpush.xpose.msra.mxu0 %v237
    %255 = vmatmul.f32.gmra.mxu0 %v235
    %v256 = vpop.f32.mrf.mxu0
    %v257 = vadd.f32 0.0, %v256
    %258 = vdwg.mxu0
    %v259 = vsel %vm104, %v257, -inf
    %260 = vmax.xlane.f32.xlu0 %v259
    %v261 = vpop.xlane.xlu0 %260
    %v262 = vsub.f32 %v257, %v261
    %v263 = vmul.f32 %v262, 1.442695
    %v264 = vpow.pop %v263
    %v265 = vsel %vm104, %v264, 0.0
    %266 = vadd.xlane.f32.xlu0 %v265
    %v267 = vpop.xlane.xlu0 %266
    %v268 = vrcp.pop %v267
    %v269 = vmul.f32 %v264, %v268
    %270 = vrot.lane.b32.xlu0 %v96, 48
    %v271 = vpop.permute.xlu0 %270
    %v274 = vsel %vm104, %v269, 0
    %276 = vmatpush.msra.mxu0 0.0
    %277 = vmatpush.msra.mxu0 0.0
    %278 = vmatpush.msra.mxu0 0.0
    %279 = vmatpush.msra.mxu0 0.0
    %280 = vmatpush.msra.mxu0 0.0
    %281 = vmatpush.msra.mxu0 0.0
    %282 = vmatpush.msra.mxu0 0.0
    %283 = vmatpush.msra.mxu0 0.0
    %284 = vmatpush.msra.mxu0 0.0
    %285 = vmatpush.msra.mxu0 0.0
    %286 = vmatpush.msra.mxu0 0.0
    %287 = vmatpush.msra.mxu0 0.0
    %288 = vmatpush.msra.mxu0 0.0
    %289 = vmatpush.msra.mxu0 0.0
    %290 = vmatpush.msra.mxu0 0.0
    %291 = vmatpush.msra.mxu0 %v271
    %292 = vmatmul.f32.gmra.mxu0 %v274
    %v293 = vpop.f32.mrf.mxu0
    %v294 = vadd.f32 0.0, %v293
    %295 = vdwg.mxu0
    %296 = vrot.lane.b32.xlu0 %v96, 104
    %v297 = vpop.permute.xlu0 %296
    %298 = vrot.lane.b32.xlu0 %v96, 72
    %v299 = vpop.permute.xlu0 %298
    %v300 = vsel %vm104, %v297, 0
    %v302 = vsel %vm104, %v299, 0
    %304 = vmatpush.xpose.msra.mxu0 0.0
    %305 = vmatpush.xpose.msra.mxu0 0.0
    %306 = vmatpush.xpose.msra.mxu0 0.0
    %307 = vmatpush.xpose.msra.mxu0 0.0
    %308 = vmatpush.xpose.msra.mxu0 0.0
    %309 = vmatpush.xpose.msra.mxu0 0.0
    %310 = vmatpush.xpose.msra.mxu0 0.0
    %311 = vmatpush.xpose.msra.mxu0 0.0
    %312 = vmatpush.xpose.msra.mxu0 0.0
    %313 = vmatpush.xpose.msra.mxu0 0.0
    %314 = vmatpush.xpose.msra.mxu0 0.0
    %315 = vmatpush.xpose.msra.mxu0 0.0
    %316 = vmatpush.xpose.msra.mxu0 0.0
    %317 = vmatpush.xpose.msra.mxu0 0.0
    %318 = vmatpush.xpose.msra.mxu0 0.0
    %319 = vmatpush.xpose.msra.mxu0 %v302
    %320 = vmatmul.f32.gmra.mxu0 %v300
    %v321 = vpop.f32.mrf.mxu0
    %v322 = vadd.f32 0.0, %v321
    %323 = vdwg.mxu0
    %v324 = vsel %vm104, %v322, -inf
    %325 = vmax.xlane.f32.xlu0 %v324
    %v326 = vpop.xlane.xlu0 %325
    %v327 = vsub.f32 %v322, %v326
    %v328 = vmul.f32 %v327, 1.442695
    %v329 = vpow.pop %v328
    %v330 = vsel %vm104, %v329, 0.0
    %331 = vadd.xlane.f32.xlu0 %v330
    %v332 = vpop.xlane.xlu0 %331
    %v333 = vrcp.pop %v332
    %v334 = vmul.f32 %v329, %v333
    %335 = vrot.lane.b32.xlu0 %v96, 40
    %v336 = vpop.permute.xlu0 %335
    %v339 = vsel %vm104, %v334, 0
    %341 = vmatpush.msra.mxu0 0.0
    %342 = vmatpush.msra.mxu0 0.0
    %343 = vmatpush.msra.mxu0 0.0
    %344 = vmatpush.msra.mxu0 0.0
    %345 = vmatpush.msra.mxu0 0.0
    %346 = vmatpush.msra.mxu0 0.0
    %347 = vmatpush.msra.mxu0 0.0
    %348 = vmatpush.msra.mxu0 0.0
    %349 = vmatpush.msra.mxu0 0.0
    %350 = vmatpush.msra.mxu0 0.0
    %351 = vmatpush.msra.mxu0 0.0
    %352 = vmatpush.msra.mxu0 0.0
    %353 = vmatpush.msra.mxu0 0.0
    %354 = vmatpush.msra.mxu0 0.0
    %355 = vmatpush.msra.mxu0 0.0
    %356 = vmatpush.msra.mxu0 %v336
    %357 = vmatmul.f32.gmra.mxu0 %v339
    %v358 = vpop.f32.mrf.mxu0
    %v359 = vadd.f32 0.0, %v358
    %360 = vdwg.mxu0
    %361 = vst.msk [vmem:[#allocation5] sm:$0xff] %vm104, %v139
    %362 = vst.msk [vmem:[#allocation5 + $0x8] sm:$0xff] %vm104, %v204
    %363 = vst.msk [vmem:[#allocation5 + $0x10] sm:$0xff] %vm104, %v269
    %364 = vst.msk [vmem:[#allocation5 + $0x18] sm:$0xff] %vm104, %v334
    %366 = vrot.lane.b32.xlu0 %v229, 8
    %v367 = vpop.permute.xlu0 %366
    %370 = vrot.lane.b32.xlu0 %v294, 16
    %v371 = vpop.permute.xlu0 %370
    %374 = vrot.lane.b32.xlu0 %v359, 24
    %v375 = vpop.permute.xlu0 %374
    %v377 = vsel %vm104, %v164, %v367
    %vm378 = vcmask 130048
    %v379 = vsel %vm378, %v377, %v371
    %vm380 = vcmask 195584
    %v381 = vsel %vm380, %v379, %v375
    %383 = vrot.lane.b32.xlu0 %v99, 96
    %v384 = vpop.permute.xlu0 %383
    %v385 = vsel %vm104, %v99, 0
    %v387 = vsel %vm104, %v384, 0
    %389 = vmatpush.xpose.msra.mxu0 0.0
    %390 = vmatpush.xpose.msra.mxu0 0.0
    %391 = vmatpush.xpose.msra.mxu0 0.0
    %392 = vmatpush.xpose.msra.mxu0 0.0
    %393 = vmatpush.xpose.msra.mxu0 0.0
    %394 = vmatpush.xpose.msra.mxu0 0.0
    %395 = vmatpush.xpose.msra.mxu0 0.0
    %396 = vmatpush.xpose.msra.mxu0 0.0
    %397 = vmatpush.xpose.msra.mxu0 0.0
    %398 = vmatpush.xpose.msra.mxu0 0.0
    %399 = vmatpush.xpose.msra.mxu0 0.0
    %400 = vmatpush.xpose.msra.mxu0 0.0
    %401 = vmatpush.xpose.msra.mxu0 0.0
    %402 = vmatpush.xpose.msra.mxu0 0.0
    %403 = vmatpush.xpose.msra.mxu0 0.0
    %404 = vmatpush.xpose.msra.mxu0 %v387
    %405 = vmatmul.f32.gmra.mxu0 %v385
    %v406 = vpop.f32.mrf.mxu0
    %v407 = vadd.f32 0.0, %v406
    %408 = vdwg.mxu0
    %v409 = vsel %vm104, %v407, -inf
    %410 = vmax.xlane.f32.xlu0 %v409
    %v411 = vpop.xlane.xlu0 %410
    %v412 = vsub.f32 %v407, %v411
    %v413 = vmul.f32 %v412, 1.442695
    %v414 = vpow.pop %v413
    %v415 = vsel %vm104, %v414, 0.0
    %416 = vadd.xlane.f32.xlu0 %v415
    %v417 = vpop.xlane.xlu0 %416
    %v418 = vrcp.pop %v417
    %v419 = vmul.f32 %v414, %v418
    %420 = vrot.lane.b32.xlu0 %v99, 64
    %v421 = vpop.permute.xlu0 %420
    %v424 = vsel %vm104, %v419, 0
    %426 = vmatpush.msra.mxu0 0.0
    %427 = vmatpush.msra.mxu0 0.0
    %428 = vmatpush.msra.mxu0 0.0
    %429 = vmatpush.msra.mxu0 0.0
    %430 = vmatpush.msra.mxu0 0.0
    %431 = vmatpush.msra.mxu0 0.0
    %432 = vmatpush.msra.mxu0 0.0
    %433 = vmatpush.msra.mxu0 0.0
    %434 = vmatpush.msra.mxu0 0.0
    %435 = vmatpush.msra.mxu0 0.0
    %436 = vmatpush.msra.mxu0 0.0
    %437 = vmatpush.msra.mxu0 0.0
    %438 = vmatpush.msra.mxu0 0.0
    %439 = vmatpush.msra.mxu0 0.0
    %440 = vmatpush.msra.mxu0 0.0
    %441 = vmatpush.msra.mxu0 %v421
    %442 = vmatmul.f32.gmra.mxu0 %v424
    %v443 = vpop.f32.mrf.mxu0
    %v444 = vadd.f32 0.0, %v443
    %445 = vdwg.mxu0
    %446 = vrot.lane.b32.xlu0 %v99, 120
    %v447 = vpop.permute.xlu0 %446
    %448 = vrot.lane.b32.xlu0 %v99, 88
    %v449 = vpop.permute.xlu0 %448
    %v450 = vsel %vm104, %v447, 0
    %v452 = vsel %vm104, %v449, 0
    %454 = vmatpush.xpose.msra.mxu0 0.0
    %455 = vmatpush.xpose.msra.mxu0 0.0
    %456 = vmatpush.xpose.msra.mxu0 0.0
    %457 = vmatpush.xpose.msra.mxu0 0.0
    %458 = vmatpush.xpose.msra.mxu0 0.0
    %459 = vmatpush.xpose.msra.mxu0 0.0
    %460 = vmatpush.xpose.msra.mxu0 0.0
    %461 = vmatpush.xpose.msra.mxu0 0.0
    %462 = vmatpush.xpose.msra.mxu0 0.0
    %463 = vmatpush.xpose.msra.mxu0 0.0
    %464 = vmatpush.xpose.msra.mxu0 0.0
    %465 = vmatpush.xpose.msra.mxu0 0.0
    %466 = vmatpush.xpose.msra.mxu0 0.0
    %467 = vmatpush.xpose.msra.mxu0 0.0
    %468 = vmatpush.xpose.msra.mxu0 0.0
    %469 = vmatpush.xpose.msra.mxu0 %v452
    %470 = vmatmul.f32.gmra.mxu0 %v450
    %v471 = vpop.f32.mrf.mxu0
    %v472 = vadd.f32 0.0, %v471
    %473 = vdwg.mxu0
    %v474 = vsel %vm104, %v472, -inf
    %475 = vmax.xlane.f32.xlu0 %v474
    %v476 = vpop.xlane.xlu0 %475
    %v477 = vsub.f32 %v472, %v476
    %v478 = vmul.f32 %v477, 1.442695
    %v479 = vpow.pop %v478
    %v480 = vsel %vm104, %v479, 0.0
    %481 = vadd.xlane.f32.xlu0 %v480
    %v482 = vpop.xlane.xlu0 %481
    %v483 = vrcp.pop %v482
    %v484 = vmul.f32 %v479, %v483
    %485 = vrot.lane.b32.xlu0 %v99, 56
    %v486 = vpop.permute.xlu0 %485
    %v489 = vsel %vm104, %v484, 0
    %491 = vmatpush.msra.mxu0 0.0
    %492 = vmatpush.msra.mxu0 0.0
    %493 = vmatpush.msra.mxu0 0.0
    %494 = vmatpush.msra.mxu0 0.0
    %495 = vmatpush.msra.mxu0 0.0
    %496 = vmatpush.msra.mxu0 0.0
    %497 = vmatpush.msra.mxu0 0.0
    %498 = vmatpush.msra.mxu0 0.0
    %499 = vmatpush.msra.mxu0 0.0
    %500 = vmatpush.msra.mxu0 0.0
    %501 = vmatpush.msra.mxu0 0.0
    %502 = vmatpush.msra.mxu0 0.0
    %503 = vmatpush.msra.mxu0 0.0
    %504 = vmatpush.msra.mxu0 0.0
    %505 = vmatpush.msra.mxu0 0.0
    %506 = vmatpush.msra.mxu0 %v486
    %507 = vmatmul.f32.gmra.mxu0 %v489
    %v508 = vpop.f32.mrf.mxu0
    %v509 = vadd.f32 0.0, %v508
    %510 = vdwg.mxu0
    %511 = vrot.lane.b32.xlu0 %v99, 112
    %v512 = vpop.permute.xlu0 %511
    %513 = vrot.lane.b32.xlu0 %v99, 80
    %v514 = vpop.permute.xlu0 %513
    %v515 = vsel %vm104, %v512, 0
    %v517 = vsel %vm104, %v514, 0
    %519 = vmatpush.xpose.msra.mxu0 0.0
    %520 = vmatpush.xpose.msra.mxu0 0.0
    %521 = vmatpush.xpose.msra.mxu0 0.0
    %522 = vmatpush.xpose.msra.mxu0 0.0
    %523 = vmatpush.xpose.msra.mxu0 0.0
    %524 = vmatpush.xpose.msra.mxu0 0.0
    %525 = vmatpush.xpose.msra.mxu0 0.0
    %526 = vmatpush.xpose.msra.mxu0 0.0
    %527 = vmatpush.xpose.msra.mxu0 0.0
    %528 = vmatpush.xpose.msra.mxu0 0.0
    %529 = vmatpush.xpose.msra.mxu0 0.0
    %530 = vmatpush.xpose.msra.mxu0 0.0
    %531 = vmatpush.xpose.msra.mxu0 0.0
    %532 = vmatpush.xpose.msra.mxu0 0.0
    %533 = vmatpush.xpose.msra.mxu0 0.0
    %534 = vmatpush.xpose.msra.mxu0 %v517
    %535 = vmatmul.f32.gmra.mxu0 %v515
    %v536 = vpop.f32.mrf.mxu0
    %v537 = vadd.f32 0.0, %v536
    %538 = vdwg.mxu0
    %v539 = vsel %vm104, %v537, -inf
    %540 = vmax.xlane.f32.xlu0 %v539
    %v541 = vpop.xlane.xlu0 %540
    %v542 = vsub.f32 %v537, %v541
    %v543 = vmul.f32 %v542, 1.442695
    %v544 = vpow.pop %v543
    %v545 = vsel %vm104, %v544, 0.0
    %546 = vadd.xlane.f32.xlu0 %v545
    %v547 = vpop.xlane.xlu0 %546
    %v548 = vrcp.pop %v547
    %v549 = vmul.f32 %v544, %v548
    %550 = vrot.lane.b32.xlu0 %v99, 48
    %v551 = vpop.permute.xlu0 %550
    %v554 = vsel %vm104, %v549, 0
    %556 = vmatpush.msra.mxu0 0.0
    %557 = vmatpush.msra.mxu0 0.0
    %558 = vmatpush.msra.mxu0 0.0
    %559 = vmatpush.msra.mxu0 0.0
    %560 = vmatpush.msra.mxu0 0.0
    %561 = vmatpush.msra.mxu0 0.0
    %562 = vmatpush.msra.mxu0 0.0
    %563 = vmatpush.msra.mxu0 0.0
    %564 = vmatpush.msra.mxu0 0.0
    %565 = vmatpush.msra.mxu0 0.0
    %566 = vmatpush.msra.mxu0 0.0
    %567 = vmatpush.msra.mxu0 0.0
    %568 = vmatpush.msra.mxu0 0.0
    %569 = vmatpush.msra.mxu0 0.0
    %570 = vmatpush.msra.mxu0 0.0
    %571 = vmatpush.msra.mxu0 %v551
    %572 = vmatmul.f32.gmra.mxu0 %v554
    %v573 = vpop.f32.mrf.mxu0
    %v574 = vadd.f32 0.0, %v573
    %575 = vdwg.mxu0
    %576 = vrot.lane.b32.xlu0 %v99, 104
    %v577 = vpop.permute.xlu0 %576
    %578 = vrot.lane.b32.xlu0 %v99, 72
    %v579 = vpop.permute.xlu0 %578
    %v580 = vsel %vm104, %v577, 0
    %v582 = vsel %vm104, %v579, 0
    %584 = vmatpush.xpose.msra.mxu0 0.0
    %585 = vmatpush.xpose.msra.mxu0 0.0
    %586 = vmatpush.xpose.msra.mxu0 0.0
    %587 = vmatpush.xpose.msra.mxu0 0.0
    %588 = vmatpush.xpose.msra.mxu0 0.0
    %589 = vmatpush.xpose.msra.mxu0 0.0
    %590 = vmatpush.xpose.msra.mxu0 0.0
    %591 = vmatpush.xpose.msra.mxu0 0.0
    %592 = vmatpush.xpose.msra.mxu0 0.0
    %593 = vmatpush.xpose.msra.mxu0 0.0
    %594 = vmatpush.xpose.msra.mxu0 0.0
    %595 = vmatpush.xpose.msra.mxu0 0.0
    %596 = vmatpush.xpose.msra.mxu0 0.0
    %597 = vmatpush.xpose.msra.mxu0 0.0
    %598 = vmatpush.xpose.msra.mxu0 0.0
    %599 = vmatpush.xpose.msra.mxu0 %v582
    %600 = vmatmul.f32.gmra.mxu0 %v580
    %v601 = vpop.f32.mrf.mxu0
    %v602 = vadd.f32 0.0, %v601
    %603 = vdwg.mxu0
    %v604 = vsel %vm104, %v602, -inf
    %605 = vmax.xlane.f32.xlu0 %v604
    %v606 = vpop.xlane.xlu0 %605
    %v607 = vsub.f32 %v602, %v606
    %v608 = vmul.f32 %v607, 1.442695
    %v609 = vpow.pop %v608
    %v610 = vsel %vm104, %v609, 0.0
    %611 = vadd.xlane.f32.xlu0 %v610
    %v612 = vpop.xlane.xlu0 %611
    %v613 = vrcp.pop %v612
    %v614 = vmul.f32 %v609, %v613
    %615 = vrot.lane.b32.xlu0 %v99, 40
    %v616 = vpop.permute.xlu0 %615
    %v619 = vsel %vm104, %v614, 0
    %621 = vmatpush.msra.mxu0 0.0
    %622 = vmatpush.msra.mxu0 0.0
    %623 = vmatpush.msra.mxu0 0.0
    %624 = vmatpush.msra.mxu0 0.0
    %625 = vmatpush.msra.mxu0 0.0
    %626 = vmatpush.msra.mxu0 0.0
    %627 = vmatpush.msra.mxu0 0.0
    %628 = vmatpush.msra.mxu0 0.0
    %629 = vmatpush.msra.mxu0 0.0
    %630 = vmatpush.msra.mxu0 0.0
    %631 = vmatpush.msra.mxu0 0.0
    %632 = vmatpush.msra.mxu0 0.0
    %633 = vmatpush.msra.mxu0 0.0
    %634 = vmatpush.msra.mxu0 0.0
    %635 = vmatpush.msra.mxu0 0.0
    %636 = vmatpush.msra.mxu0 %v616
    %637 = vmatmul.f32.gmra.mxu0 %v619
    %v638 = vpop.f32.mrf.mxu0
    %v639 = vadd.f32 0.0, %v638
    %640 = vdwg.mxu0
    %s641 = scalar_lea.vmem [#allocation5], 32
    %642 = vst.msk [vmem:[%s641] sm:$0xff] %vm104, %v419
    %643 = vst.msk [vmem:[%s641 + $0x8] sm:$0xff] %vm104, %v484
    %644 = vst.msk [vmem:[%s641 + $0x10] sm:$0xff] %vm104, %v549
    %645 = vst.msk [vmem:[%s641 + $0x18] sm:$0xff] %vm104, %v614
    %647 = vrot.lane.b32.xlu0 %v509, 8
    %v648 = vpop.permute.xlu0 %647
    %651 = vrot.lane.b32.xlu0 %v574, 16
    %v652 = vpop.permute.xlu0 %651
    %655 = vrot.lane.b32.xlu0 %v639, 24
    %v656 = vpop.permute.xlu0 %655
    %v658 = vsel %vm104, %v444, %v648
    %v659 = vsel %vm378, %v658, %v652
    %v660 = vsel %vm380, %v659, %v656
    %v661 = vld [vmem:[%s3] sm:$0xff]
    %v662 = vld [vmem:[%s3 + $0x8] sm:$0xff]
    %v663 = vld [vmem:[%s3 + $0x10] sm:$0xff]
    %v664 = vld [vmem:[%s3 + $0x18] sm:$0xff]
    %v665 = vld [vmem:[%s4] sm:$0x1]
    %v667 = vperm.slane %v665, 0
    %v670 = vsel %vm71, %v381, 0
    %v673 = vsel %vm71, %v660, 0
    %675 = vmatpush.msra.mxu0 0.0
    %676 = vmatpush.msra.mxu0 0.0
    %677 = vmatpush.msra.mxu0 0.0
    %678 = vmatpush.msra.mxu0 0.0
    %679 = vmatpush.msra.mxu0 0.0
    %680 = vmatpush.msra.mxu0 0.0
    %681 = vmatpush.msra.mxu0 0.0
    %682 = vmatpush.msra.mxu0 0.0
    %683 = vmatpush.msra.mxu0 0.0
    %684 = vmatpush.msra.mxu0 0.0
    %685 = vmatpush.msra.mxu0 0.0
    %686 = vmatpush.msra.mxu0 0.0
    %687 = vmatpush.msra.mxu0 %v664
    %688 = vmatpush.msra.mxu0 %v663
    %689 = vmatpush.msra.mxu0 %v662
    %690 = vmatpush.msra.mxu0 %v661
    %691 = vmatmul.f32.gmra.mxu0 %v670
    %v692 = vpop.f32.mrf.mxu0
    %v693 = vadd.f32 %v667, %v692
    %694 = vmatmul.f32.gmra.mxu0 %v673
    %v695 = vpop.f32.mrf.mxu0
    %v696 = vadd.f32 %v667, %v695
    %697 = vdwg.mxu0
    %v698 = vadd.f32 %v61, %v693
    %v699 = vadd.f32 %v62, %v696
    %v700 = vld [vmem:[%s5] sm:$0x1]
    %v701 = vld [vmem:[%s6] sm:$0x1]
    %v702 = vsel %vm71, %v698, 0.0
    %703 = vadd.xlane.f32.xlu0 %v702
    %v704 = vpop.xlane.xlu0 %703
    %v705 = vsel %vm71, %v699, 0.0
    %706 = vadd.xlane.f32.xlu0 %v705
    %v707 = vpop.xlane.xlu0 %706
    %v708 = vrcp.pop 32.0
    %v709 = vmul.f32 32.0, %v708
    %v710 = vsub.f32 1.0, %v709
    %v711 = vmul.f32 %v708, %v710
    %v712 = vadd.f32 %v708, %v711
    %vm713 = vweird.f32 %v708
    %v714 = vsel %vm713, %v708, %v712
    %v715 = vmul.f32 %v704, %v714
    %v716 = vmul.f32 %v707, %v714
    %v717 = vsub.f32 %v698, %v715
    %v718 = vsub.f32 %v699, %v716
    %v719 = vmul.f32 %v717, %v717
    %v720 = vmul.f32 %v718, %v718
    %v721 = vsel %vm71, %v719, 0.0
    %722 = vadd.xlane.f32.xlu0 %v721
    %v723 = vpop.xlane.xlu0 %722
    %v724 = vsel %vm71, %v720, 0.0
    %725 = vadd.xlane.f32.xlu0 %v724
    %v726 = vpop.xlane.xlu0 %725
    %v727 = vmul.f32 %v723, %v714
    %v728 = vmul.f32 %v726, %v714
    %v729 = vadd.f32 %v727, 1e-05
    %v730 = vadd.f32 %v728, 1e-05
    %v731 = vrsqrt.pop %v729
    %v732 = vmul.f32 %v731, %v729
    %v733 = vmul.f32 %v732, %v731
    %v734 = vmul.f32 0.5, %v733
    %v735 = vsub.f32 1.5, %v734
    %v736 = vmul.f32 %v731, %v735
    %vm737 = vweird.f32 %v729
    %vm738 = vweird.f32 %v731
    %vm739 = vmor %vm737, %vm738
    %v740 = vsel %vm739, %v731, %v736
    %v741 = vrsqrt.pop %v730
    %v742 = vmul.f32 %v741, %v730
    %v743 = vmul.f32 %v742, %v741
    %v744 = vmul.f32 0.5, %v743
    %v745 = vsub.f32 1.5, %v744
    %v746 = vmul.f32 %v741, %v745
    %vm747 = vweird.f32 %v730
    %vm748 = vweird.f32 %v741
    %vm749 = vmor %vm747, %vm748
    %v750 = vsel %vm749, %v741, %v746
    %v751 = vmul.f32 %v717, %v740
    %v752 = vmul.f32 %v718, %v750
    %v754 = vperm.slane %v700, 0
    %v756 = vmul.f32 %v751, %v754
    %v757 = vmul.f32 %v752, %v754
    %v759 = vperm.slane %v701, 0
    %v761 = vadd.f32 %v756, %v759
    %v762 = vadd.f32 %v757, %v759
    %v763 = vld [vmem:[%s7] sm:$0xff]
    %v764 = vld [vmem:[%s7 + $0x8] sm:$0xff]
    %v765 = vld [vmem:[%s7 + $0x10] sm:$0xff]
    %v766 = vld [vmem:[%s7 + $0x18] sm:$0xff]
    %v767 = vld [vmem:[%s8] sm:$0x1]
    %v769 = vperm.slane %v767, 0
    %v772 = vsel %vm71, %v761, 0
    %v775 = vsel %vm71, %v762, 0
    %777 = vmatpush.msra.mxu0 0.0
    %778 = vmatpush.msra.mxu0 0.0
    %779 = vmatpush.msra.mxu0 0.0
    %780 = vmatpush.msra.mxu0 0.0
    %781 = vmatpush.msra.mxu0 0.0
    %782 = vmatpush.msra.mxu0 0.0
    %783 = vmatpush.msra.mxu0 0.0
    %784 = vmatpush.msra.mxu0 0.0
    %785 = vmatpush.msra.mxu0 0.0
    %786 = vmatpush.msra.mxu0 0.0
    %787 = vmatpush.msra.mxu0 0.0
    %788 = vmatpush.msra.mxu0 0.0
    %789 = vmatpush.msra.mxu0 %v766
    %790 = vmatpush.msra.mxu0 %v765
    %791 = vmatpush.msra.mxu0 %v764
    %792 = vmatpush.msra.mxu0 %v763
    %793 = vmatmul.f32.gmra.mxu0 %v772
    %v794 = vpop.f32.mrf.mxu0
    %v795 = vadd.f32 %v769, %v794
    %796 = vmatmul.f32.gmra.mxu0 %v775
    %v797 = vpop.f32.mrf.mxu0
    %v798 = vadd.f32 %v769, %v797
    %799 = vdwg.mxu0
    %v800 = vmul.f32 %v795, 0.5
    %v801 = vmul.f32 %v798, 0.5
    %v802 = vmul.f32 %v795, 0.70710677
    %v803 = vmul.f32 %v798, 0.70710677
    %v804 = vmul.f32 %v802, %v802
    %v805 = vmin.f32 16.0, %v804
    %v806 = vmul.f32 %v805, 2.1237322e-06
    %v807 = vadd.f32 %v806, 0.00028619796
    %v808 = vmul.f32 %v805, %v807
    %v809 = vadd.f32 %v808, 0.0036580483
    %v810 = vmul.f32 %v805, %v809
    %v811 = vadd.f32 %v810, 0.05243302
    %v812 = vmul.f32 %v805, %v811
    %v813 = vadd.f32 %v812, 0.18741608
    %v814 = vmul.f32 %v805, %v813
    %v815 = vadd.f32 %v814, 1.1283791
    %v816 = vmul.f32 %v802, %v815
    %v817 = vmul.f32 %v805, 3.8918573e-05
    %v818 = vadd.f32 %v817, 0.001143296
    %v819 = vmul.f32 %v805, %v818
    %v820 = vadd.f32 %v819, 0.014752088
    %v821 = vmul.f32 %v805, %v820
    %v822 = vadd.f32 %v821, 0.112945676
    %v823 = vmul.f32 %v805, %v822
    %v824 = vadd.f32 %v823, 0.4994258
    %v825 = vmul.f32 %v805, %v824
    %v826 = vadd.f32 %v825, 1.0
    %v827 = vrcp.pop %v826
    %v828 = vmul.f32 %v826, %v827
    %v829 = vsub.f32 1.0, %v828
    %v830 = vmul.f32 %v827, %v829
    %v831 = vadd.f32 %v827, %v830
    %vm832 = vweird.f32 %v826
    %vm833 = vweird.f32 %v827
    %vm834 = vmor %vm832, %vm833
    %v835 = vsel %vm834, %v827, %v831
    %v836 = vand.u32 2147483647, %v826
    %vm837 = vcmp.eq.f32.partialorder %v836, 8.507059e+37
    %v838 = vand.u32 %v826, 2147483648
    %v839 = vor.u32 1.1754944e-38, %v838
    %v840 = vsel %vm837, %v839, %v835
    %v841 = vmul.f32 %v816, %v840
    %v842 = vmin.f32 %v841, 1.0
    %v843 = vmax.f32 %v842, -1.0
    %v844 = vmul.f32 %v803, %v803
    %v845 = vmin.f32 16.0, %v844
    %v846 = vmul.f32 %v845, 2.1237322e-06
    %v847 = vadd.f32 %v846, 0.00028619796
    %v848 = vmul.f32 %v845, %v847
    %v849 = vadd.f32 %v848, 0.0036580483
    %v850 = vmul.f32 %v845, %v849
    %v851 = vadd.f32 %v850, 0.05243302
    %v852 = vmul.f32 %v845, %v851
    %v853 = vadd.f32 %v852, 0.18741608
    %v854 = vmul.f32 %v845, %v853
    %v855 = vadd.f32 %v854, 1.1283791
    %v856 = vmul.f32 %v803, %v855
    %v857 = vmul.f32 %v845, 3.8918573e-05
    %v858 = vadd.f32 %v857, 0.001143296
    %v859 = vmul.f32 %v845, %v858
    %v860 = vadd.f32 %v859, 0.014752088
    %v861 = vmul.f32 %v845, %v860
    %v862 = vadd.f32 %v861, 0.112945676
    %v863 = vmul.f32 %v845, %v862
    %v864 = vadd.f32 %v863, 0.4994258
    %v865 = vmul.f32 %v845, %v864
    %v866 = vadd.f32 %v865, 1.0
    %v867 = vrcp.pop %v866
    %v868 = vmul.f32 %v866, %v867
    %v869 = vsub.f32 1.0, %v868
    %v870 = vmul.f32 %v867, %v869
    %v871 = vadd.f32 %v867, %v870
    %vm872 = vweird.f32 %v866
    %vm873 = vweird.f32 %v867
    %vm874 = vmor %vm872, %vm873
    %v875 = vsel %vm874, %v867, %v871
    %v876 = vand.u32 2147483647, %v866
    %vm877 = vcmp.eq.f32.partialorder %v876, 8.507059e+37
    %v878 = vand.u32 %v866, 2147483648
    %v879 = vor.u32 1.1754944e-38, %v878
    %v880 = vsel %vm877, %v879, %v875
    %v881 = vmul.f32 %v856, %v880
    %v882 = vmin.f32 %v881, 1.0
    %v883 = vmax.f32 %v882, -1.0
    %v884 = vadd.f32 %v843, 1.0
    %v885 = vadd.f32 %v883, 1.0
    %v886 = vmul.f32 %v800, %v884
    %v887 = vmul.f32 %v801, %v885
    %v888 = vld [vmem:[%s9] sm:$0xff]
    %v889 = vld [vmem:[%s9 + $0x8] sm:$0xff]
    %v890 = vld [vmem:[%s9 + $0x10] sm:$0xff]
    %v891 = vld [vmem:[%s9 + $0x18] sm:$0xff]
    %v892 = vld [vmem:[%s9 + $0x20] sm:$0xff]
    %v893 = vld [vmem:[%s9 + $0x28] sm:$0xff]
    %v894 = vld [vmem:[%s9 + $0x30] sm:$0xff]
    %v895 = vld [vmem:[%s9 + $0x38] sm:$0xff]
    %v896 = vld [vmem:[#allocation2] sm:$0x1]
    %v898 = vperm.slane %v896, 0
    %vm900 = vcmask 523264
    %v902 = vsel %vm900, %v886, 0
    %v905 = vsel %vm900, %v887, 0
    %907 = vmatpush.msra.mxu0 0.0
    %908 = vmatpush.msra.mxu0 0.0
    %909 = vmatpush.msra.mxu0 0.0
    %910 = vmatpush.msra.mxu0 0.0
    %911 = vmatpush.msra.mxu0 0.0
    %912 = vmatpush.msra.mxu0 0.0
    %913 = vmatpush.msra.mxu0 0.0
    %914 = vmatpush.msra.mxu0 0.0
    %915 = vmatpush.msra.mxu0 %v895
    %916 = vmatpush.msra.mxu0 %v894
    %917 = vmatpush.msra.mxu0 %v893
    %918 = vmatpush.msra.mxu0 %v892
    %919 = vmatpush.msra.mxu0 %v891
    %920 = vmatpush.msra.mxu0 %v890
    %921 = vmatpush.msra.mxu0 %v889
    %922 = vmatpush.msra.mxu0 %v888
    %923 = vmatmul.f32.gmra.mxu0 %v902
    %v924 = vpop.f32.mrf.mxu0
    %v925 = vadd.f32 %v898, %v924
    %926 = vmatmul.f32.gmra.mxu0 %v905
    %v927 = vpop.f32.mrf.mxu0
    %v928 = vadd.f32 %v898, %v927
    %929 = vdwg.mxu0
    %v930 = vadd.f32 %v761, %v925
    %v931 = vadd.f32 %v762, %v928
    %v932 = vld [vmem:[%s11] sm:$0x1]
    %v933 = vld [vmem:[%s12] sm:$0x1]
    %v934 = vsel %vm71, %v930, 0.0
    %935 = vadd.xlane.f32.xlu0 %v934
    %v936 = vpop.xlane.xlu0 %935
    %v937 = vsel %vm71, %v931, 0.0
    %938 = vadd.xlane.f32.xlu0 %v937
    %v939 = vpop.xlane.xlu0 %938
    %v940 = vmul.f32 %v936, %v714
    %v941 = vmul.f32 %v939, %v714
    %v942 = vsub.f32 %v930, %v940
    %v943 = vsub.f32 %v931, %v941
    %v944 = vmul.f32 %v942, %v942
    %v945 = vmul.f32 %v943, %v943
    %v946 = vsel %vm71, %v944, 0.0
    %947 = vadd.xlane.f32.xlu0 %v946
    %v948 = vpop.xlane.xlu0 %947
    %v949 = vsel %vm71, %v945, 0.0
    %950 = vadd.xlane.f32.xlu0 %v949
    %v951 = vpop.xlane.xlu0 %950
    %v952 = vmul.f32 %v948, %v714
    %v953 = vmul.f32 %v951, %v714
    %v954 = vadd.f32 %v952, 1e-05
    %v955 = vadd.f32 %v953, 1e-05
    %v956 = vrsqrt.pop %v954
    %v957 = vmul.f32 %v956, %v954
    %v958 = vmul.f32 %v957, %v956
    %v959 = vmul.f32 0.5, %v958
    %v960 = vsub.f32 1.5, %v959
    %v961 = vmul.f32 %v956, %v960
    %vm962 = vweird.f32 %v954
    %vm963 = vweird.f32 %v956
    %vm964 = vmor %vm962, %vm963
    %v965 = vsel %vm964, %v956, %v961
    %v966 = vrsqrt.pop %v955
    %v967 = vmul.f32 %v966, %v955
    %v968 = vmul.f32 %v967, %v966
    %v969 = vmul.f32 0.5, %v968
    %v970 = vsub.f32 1.5, %v969
    %v971 = vmul.f32 %v966, %v970
    %vm972 = vweird.f32 %v955
    %vm973 = vweird.f32 %v966
    %vm974 = vmor %vm972, %vm973
    %v975 = vsel %vm974, %v966, %v971
    %v976 = vmul.f32 %v942, %v965
    %v977 = vmul.f32 %v943, %v975
    %v979 = vperm.slane %v932, 0
    %v981 = vmul.f32 %v976, %v979
    %v982 = vmul.f32 %v977, %v979
    %v984 = vperm.slane %v933, 0
    %v986 = vadd.f32 %v981, %v984
    %v987 = vadd.f32 %v982, %v984
    %988 = vst.msk [vmem:[%s13] sm:$0xff] %vm71, %v986
    %989 = vst.msk [vmem:[%s13 + $0x8] sm:$0xff] %vm71, %v987
    // Predicated region
    $region58: #{transformer_layer_forward.1} parent=1 // pred_check
      _
    $region59: #{transformer_layer_forward.1} parent=1 // pred_check_branch
      %991 = sbr.rel (0) target = $region61
    $region60: #{transformer_layer_forward.1} parent=1 // pred_region
      _
    $region61: #{transformer_layer_forward.1} parent=1 // pred_fallthru
      _
    // Predicated region
    $region62: #{transformer_layer_forward.1} parent=1 // pred_check
      _
    $region63: #{transformer_layer_forward.1} parent=1 // pred_check_branch
      %993 = sbr.rel (0) target = $region65
    $region64: #{transformer_layer_forward.1} parent=1 // pred_region
      %995 = vsyncadd [#allocation4], 0
      %s996 = sshll.u32 [#allocation5], 4
      %s997 = int_to_ptr.vmem [resolvable:$true] %s996
      %s998 = sshll.u32 %s14, 4
      %s999 = int_to_ptr.hbm [resolvable:$true] %s998
      %1004 = dma.vmem_to_hbm [thread:$0]  %s997, 1024, %s999, [#allocation4], 128, 128, 8
    $region65: #{transformer_layer_forward.1} parent=1 // pred_fallthru
      _
    // Predicated region
    $region66: #{transformer_layer_forward.1} parent=1 // pred_check
      _
    $region67: #{transformer_layer_forward.1} parent=1 // pred_check_branch
      %1006 = sbr.rel (0) target = $region69
    $region68: #{transformer_layer_forward.1} parent=1 // pred_region
      _
    $region69: #{transformer_layer_forward.1} parent=1 // pred_fallthru
      _
    // Predicated region
    $region70: #{transformer_layer_forward.1} parent=1 // pred_check
      _
    $region71: #{transformer_layer_forward.1} parent=1 // pred_check_branch
      %1008 = sbr.rel (0) target = $region73
    $region72: #{transformer_layer_forward.1} parent=1 // pred_region
      %1010 = dma.done [#allocation4], 1024
    $region73: #{transformer_layer_forward.1} parent=1 // pred_fallthru
      _
    %1011 = vsyncpa [#allocation3], 1
    %1012 = vsyncpa [#allocation4], 1

</llo_original>
